<compile_context>
chip_gen: v7x
topology: tpu7x:2x2x1
jax: 0.10.0
libtpu: 0.0.40
codegen_flags: <defaults>
</compile_context>

<pallas_src>
import jax
import jax.numpy as jnp
import numpy as np
from jax.experimental import pallas as pl
from jax.experimental.pallas import tpu as pltpu


# ----------------------------------------------------------------------------
# Batch blocking: largest divisor of B that keeps >= 2 grid steps (so v7x
# megacore "parallel" sharding has work on both TensorCores) and <= 8.
# ----------------------------------------------------------------------------
def _choose_batch_block(B, max_blk=8):
    cap = min(max_blk, max(1, B // 2))
    for cand in range(cap, 0, -1):
        if B % cand == 0:
            return cand
    return 1


# ----------------------------------------------------------------------------
# Fused Pallas kernel: input projections + MergeSnE1 + GraphAndConvStack +
# final_mix + double sum.  One grid step per B_blk batch elements.
# ----------------------------------------------------------------------------
def make_fused_kernel(chans, N, L, B_blk, Cg, LCp):
    """chans: per-layer output channel counts (C0, ..., C_{nl-1})."""
    num_layers = len(chans)
    widths = [L * c for c in chans]          # lane width of each layer's activation
    R = B_blk * N                            # resident row count (sublanes)

    def kernel(*refs):
        (adj_ref, x_ref, emb_ref, wgl_ref, wgc_ref, wpl_ref, wpc_ref) = refs[:7]
        layer_refs = refs[7:7 + 2 * (num_layers - 1)]
        const_ref = refs[7 + 2 * (num_layers - 1)]
        o_ref = refs[-1]

        def crow(idx, w):
            # one packed constant row (zero-padded to slab width), sliced to
            # this layer's lane width.
            return const_ref[idx:idx + 1, :][:, :w]

        def adj_apply(adj3, m2, w):
            # per-batch adjacency contraction: (N,N) @ (N, L*C) lane-dense matmul
            if B_blk == 1:
                return jnp.dot(adj3[0], m2, preferred_element_type=jnp.float32)
            g3 = jnp.einsum("bnm,bmx->bnx", adj3, m2.reshape(B_blk, N, w),
                            preferred_element_type=jnp.float32)
            return g3.reshape(R, w)

        adj = adj_ref[...]                                            # (B_blk, N, N) f32
        rowsum = jnp.sum(adj.reshape(R, N), axis=1, keepdims=True)    # (R, 1)

        # -------- layer 0 (in_graph / in_prot / MergeSnE1 folded in) --------
        w0 = widths[0]
        xg = x_ref[...].reshape(R, Cg)                                # (R, Cg)
        emb = emb_ref[...].reshape(B_blk, LCp)                        # (B_blk, L*Cp)

        xg_lin = (jnp.dot(xg, wgl_ref[...], preferred_element_type=jnp.float32)
                  + crow(0, w0))                                      # (R, L*C0)
        xg_conv = jnp.dot(xg, wgc_ref[...], preferred_element_type=jnp.float32)
        p_lin = (jnp.dot(emb, wpl_ref[...], preferred_element_type=jnp.float32)
                 + crow(2, w0))                                       # (B_blk, L*C0)
        p_conv = (jnp.dot(emb, wpc_ref[...], preferred_element_type=jnp.float32)
                  + crow(3, w0))

        graph_part = adj_apply(adj, xg_lin, w0) + xg_conv + crow(1, w0)
        p_lin_b = jnp.broadcast_to(p_lin[:, None, :], (B_blk, N, w0)).reshape(R, w0)
        p_conv_b = jnp.broadcast_to(p_conv[:, None, :], (B_blk, N, w0)).reshape(R, w0)
        h = graph_part + rowsum * p_lin_b + p_conv_b                  # (R, L*C0)

        # final_mix contribution of layer 0: full-width VPU multiply + reduce.
        acc_rows = jnp.sum(h * crow(4, w0), axis=1, keepdims=True)    # (R, 1)

        # -------- remaining GraphAndConv layers (unrolled, VMEM resident) ---
        for i in range(1, num_layers):
            wlin_ref = layer_refs[2 * (i - 1)]
            wconv_ref = layer_refs[2 * (i - 1) + 1]
            w = widths[i]
            hr = jnp.maximum(h, 0.0)                                  # lane-dense ReLU
            xw_lin = jnp.dot(hr, wlin_ref[...],
                             preferred_element_type=jnp.float32)      # (R, L*Cout)
            xw_conv = jnp.dot(hr, wconv_ref[...],
                              preferred_element_type=jnp.float32)
            h = adj_apply(adj, xw_lin, w) + xw_conv + crow(5 + 2 * (i - 1), w)
            acc_rows = acc_rows + jnp.sum(h * crow(6 + 2 * (i - 1), w),
                                          axis=1, keepdims=True)

        # per-batch double sum over nodes + string positions + channels
        per_b = jnp.sum(acc_rows.reshape(B_blk, N, 1), axis=1)        # (B_blk, 1)
        # dense (8, 128) store per batch element; [b, 0, 0] carries the value.
        o_ref[...] = jnp.broadcast_to(per_b[:, :, None], (B_blk, 8, 128))

    return kernel


# ----------------------------------------------------------------------------
# Wrapper-side weight folding (done once, in fp32).
# ----------------------------------------------------------------------------
def _prepare_fused_weights(params, L):
    Wg, bg = params["Wg"], params["bg"]            # (Cg, Mg), (1, Mg)
    Wp, bp = params["Wp"], params["bp"]            # (Cp, Mp), (1, Mp)
    Mg = Wg.shape[1]
    stack = params["stack"]
    wl0, bl0, wc0, bc0 = stack[0]
    chans = [w[0].shape[1] for w in stack]         # per-layer output channels
    widths = [L * c for c in chans]
    slab_w = max(128, -(-max(widths) // 128) * 128)
    eyeL = jnp.eye(L, dtype=jnp.float32)

    def tile_l(w):   # (K, C) -> (K, L*C): same weight at every string position
        return jnp.tile(w, (1, L))

    # layer 0: in_graph / in_prot projections folded in.  Graph half tiled
    # along the string axis; protein half block-diagonal over the string axis
    # so the kernel output is lane-dense with zero in-kernel relayouts.
    wgl = tile_l(Wg @ wl0[:Mg])                    # (Cg, L*C0)
    wgc = tile_l(Wg @ wc0[:Mg])                    # (Cg, L*C0)
    wpl = jnp.kron(eyeL, Wp @ wl0[Mg:])            # (L*Cp, L*C0)
    wpc = jnp.kron(eyeL, Wp @ wc0[Mg:])            # (L*Cp, L*C0)

    # hidden / output layers: kron(I_L, W) so channel matmuls act directly on
    # the lane-dense (rows, L*C) activation (lin / conv kept separate).
    layer_ws = []
    for (wl, bl, wc, bc) in stack[1:]:
        layer_ws.append(jnp.kron(eyeL, wl))        # (L*Cin, L*Cout)
        layer_ws.append(jnp.kron(eyeL, wc))

    # pack every small constant into one padded f32 slab (one replicated input)
    offs = np.cumsum([0] + chans)
    Wf = params["Wf"]

    def row(v, w):
        return jnp.pad(v, ((0, 0), (0, slab_w - w)))

    rows = [
        row(tile_l(bg @ wl0[:Mg]), widths[0]),                        # 0: graph lin-path bias
        row(tile_l(bg @ wc0[:Mg] + bl0 + bc0), widths[0]),            # 1: graph conv-path + layer bias
        row(tile_l(bp @ wl0[Mg:]), widths[0]),                        # 2: prot lin-path bias
        row(tile_l(bp @ wc0[Mg:]), widths[0]),                        # 3: prot conv-path bias
        row(tile_l(Wf[int(offs[0]):int(offs[1]), 0][None, :]), widths[0]),  # 4: final_mix slice 0
    ]
    for i, (wl, bl, wc, bc) in enumerate(stack[1:], start=1):
        rows.append(row(tile_l(bl + bc), widths[i]))                  # 5 + 2*(i-1)
        rows.append(row(tile_l(Wf[int(offs[i]):int(offs[i + 1]), 0][None, :]),
                        widths[i]))                                   # 6 + 2*(i-1)
    const = jnp.concatenate(rows, axis=0)
    pad_rows = (-const.shape[0]) % 8
    if pad_rows:
        const = jnp.pad(const, ((0, pad_rows), (0, 0)))
    return chans, wgl, wgc, wpl, wpc, layer_ws, const


# ----------------------------------------------------------------------------
# Model forward (single fused pallas_call).
# ----------------------------------------------------------------------------
def init_params(key, in_g, in_p, merge_g, merge_p, hidden_list, out_ch, vocab=21):
    keys = jax.random.split(key, 16)
    p = {}
    p["emb_table"] = 0.1 * jax.random.normal(keys[0], (vocab, in_p), jnp.float32)
    p["Wg"] = 0.1 * jax.random.normal(keys[1], (in_g, merge_g), jnp.float32)
    p["bg"] = 0.1 * jax.random.normal(keys[2], (1, merge_g), jnp.float32)
    p["Wp"] = 0.1 * jax.random.normal(keys[3], (in_p, merge_p), jnp.float32)
    p["bp"] = 0.1 * jax.random.normal(keys[4], (1, merge_p), jnp.float32)

    chans = [merge_g + merge_p] + list(hidden_list) + [out_ch]
    stack = []
    k = keys[5]
    for cin, cout in zip(chans[:-1], chans[1:]):
        k, k1, k2, k3, k4 = jax.random.split(k, 5)
        stack.append((
            0.1 * jax.random.normal(k1, (cin, cout), jnp.float32),   # Wlin
            0.1 * jax.random.normal(k2, (1, cout), jnp.float32),     # blin
            0.1 * jax.random.normal(k3, (cin, cout), jnp.float32),   # Wconv (k=1)
            0.1 * jax.random.normal(k4, (1, cout), jnp.float32),     # bconv
        ))
    p["stack"] = stack
    total = sum(hidden_list) + out_ch
    p["Wf"] = 0.1 * jax.random.normal(keys[6], (total, 1), jnp.float32)
    return p


def embed_and_pad(emb_table, prot_sequences):
    # TODO(synk): pretrained LM replaced by deterministic embedding lookup.
    embs = [emb_table[p] for p in prot_sequences]
    L = max(int(e.shape[0]) for e in embs)
    return jnp.stack(
        [jnp.pad(e, ((0, L - e.shape[0]), (0, 0))) for e in embs], axis=0)  # (B,L,Cp)


def binding_model_forward(params, adj, x, prot_sequences):
    emb = embed_and_pad(params["emb_table"], prot_sequences)       # (B, L, Cp)
    B, N, Cg = x.shape
    L, Cp = int(emb.shape[1]), int(emb.shape[2])
    emb_flat = emb.reshape(B, 1, L * Cp)                           # lane-dense string axis

    chans, wgl, wgc, wpl, wpc, layer_ws, const = _prepare_fused_weights(params, L)
    B_blk = _choose_batch_block(B)
    kernel = make_fused_kernel(tuple(chans), N, L, B_blk, Cg, L * Cp)

    weight_args = [wgl, wgc, wpl, wpc] + layer_ws + [const]

    def rep(a):   # replicated (whole-array) weight / constant-slab spec
        nd = a.ndim
        def imap(b):
            return (0,) * nd
        return pl.BlockSpec(a.shape, imap)

    in_specs = [
        pl.BlockSpec((B_blk, N, N), lambda b: (b, 0, 0)),          # adjacency
        pl.BlockSpec((B_blk, N, Cg), lambda b: (b, 0, 0)),         # graph node features
        pl.BlockSpec((B_blk, 1, L * Cp), lambda b: (b, 0, 0)),     # flat protein embeddings
    ] + [rep(a) for a in weight_args]

    out = pl.pallas_call(
        kernel,
        out_shape=jax.ShapeDtypeStruct((B, 8, 128), jnp.float32),
        grid=(B // B_blk,),
        in_specs=in_specs,
        out_specs=pl.BlockSpec((B_blk, 8, 128), lambda b: (b, 0, 0)),
        compiler_params=pltpu.CompilerParams(
            dimension_semantics=("parallel",)),                    # megacore on v7x
    )(adj, x, emb_flat, *weight_args)
    return out[:, 0, :1]                                           # (B, 1)


# ----------------------------------------------------------------------------
# Pure-JAX reference (module-faithful math, fp32, PyTorch B x N x L x C layout).
# ----------------------------------------------------------------------------
def reference_forward(params, adj, x, prot_sequences):
    embeddings = embed_and_pad(params["emb_table"], prot_sequences)
    x_node = x @ params["Wg"] + params["bg"]
    x_prot = embeddings @ params["Wp"] + params["bp"]
    B, N, _ = x.shape
    L = embeddings.shape[1]
    yg = jnp.broadcast_to(x_node[:, :, None, :], (B, N, L, x_node.shape[-1]))
    yp = jnp.broadcast_to(x_prot[:, None, :, :], (B, N, L, x_prot.shape[-1]))
    h = jnp.concatenate([yg, yp], axis=-1)
    outs = []
    for i, (wl, bl, wc, bc) in enumerate(params["stack"]):
        if i > 0:
            h = jnp.maximum(h, 0.0)
        g = jnp.einsum("bnm,bmlc->bnlc", adj, h) @ wl + bl
        h = g + (h @ wc + bc)
        outs.append(h)
    x_cat = jnp.concatenate(outs, axis=-1)
    x_out = x_cat @ params["Wf"]                      # (B, N, L, 1)
    return jnp.sum(jnp.sum(x_out, axis=2), axis=1)    # (B, 1)


# ----------------------------------------------------------------------------
if __name__ == "__main__":
    key = jax.random.PRNGKey(0)
    B, N = 2, 8
    in_channels_graph = 6
    in_channels_prot = 10
    merge_channels_graph = 8
    merge_channels_prot = 8
    hidden_channel_list = [16, 16]
    out_channels = 8

    params = init_params(key, in_channels_graph, in_channels_prot,
                         merge_channels_graph, merge_channels_prot,
                         hidden_channel_list, out_channels)

    k1, k2, k3, k4 = jax.random.split(jax.random.PRNGKey(1), 4)
    x = jax.random.normal(k1, (B, N, in_channels_graph), jnp.float32)
    adj_raw = jax.random.uniform(k2, (B, N, N), jnp.float32)
    adj = 0.5 * (adj_raw + jnp.swapaxes(adj_raw, 1, 2))   # symmetric adjacency
    prot_sequences = [
        jax.random.randint(k3, (8,), 0, 21),
        jax.random.randint(k4, (5,), 0, 21),
    ]

    out = binding_model_forward(params, adj, x, prot_sequences)
    out = jax.block_until_ready(out)

    ref = jax.block_until_ready(reference_forward(params, adj, x, prot_sequences))
    # fp32 MXU operands reproduce the fp32 reference to ~5e-3.
    np.testing.assert_allclose(np.asarray(out), np.asarray(ref),
                               rtol=5e-3, atol=5e-3)
    print("KERNEL_OK")
</pallas_src>

<mosaic_0001>
module attributes {stable_mosaic.version = 11 : i64} {
  func.func @kernel(%arg0: i32, %arg1: memref<1x8x8xf32, #tpu.memory_space<vmem>>, %arg2: memref<1x8x6xf32, #tpu.memory_space<vmem>>, %arg3: memref<1x1x80xf32, #tpu.memory_space<vmem>>, %arg4: memref<6x128xf32, #tpu.memory_space<vmem>>, %arg5: memref<6x128xf32, #tpu.memory_space<vmem>>, %arg6: memref<80x128xf32, #tpu.memory_space<vmem>>, %arg7: memref<80x128xf32, #tpu.memory_space<vmem>>, %arg8: memref<128x128xf32, #tpu.memory_space<vmem>>, %arg9: memref<128x128xf32, #tpu.memory_space<vmem>>, %arg10: memref<128x64xf32, #tpu.memory_space<vmem>>, %arg11: memref<128x64xf32, #tpu.memory_space<vmem>>, %arg12: memref<16x128xf32, #tpu.memory_space<vmem>>, %arg13: memref<1x8x128xf32, #tpu.memory_space<vmem>>) attributes {dimension_semantics = [#tpu.dimension_semantics<parallel>], iteration_bounds = array<i64: 2>, scalar_prefetch = 0 : i64, scratch_operands = 0 : i64, tpu.core_type = #tpu.core_type<tc>, window_params = [{transform_indices = @transform_0, window_bounds = array<i64: 1, 8, 8>}, {transform_indices = @transform_1, window_bounds = array<i64: 1, 8, 6>}, {transform_indices = @transform_2, window_bounds = array<i64: 1, 1, 80>}, {pipeline_mode = #tpu.pipeline_mode<synchronous>, transform_indices = @transform_3, window_bounds = array<i64: 6, 128>}, {pipeline_mode = #tpu.pipeline_mode<synchronous>, transform_indices = @transform_4, window_bounds = array<i64: 6, 128>}, {pipeline_mode = #tpu.pipeline_mode<synchronous>, transform_indices = @transform_5, window_bounds = array<i64: 80, 128>}, {pipeline_mode = #tpu.pipeline_mode<synchronous>, transform_indices = @transform_6, window_bounds = array<i64: 80, 128>}, {pipeline_mode = #tpu.pipeline_mode<synchronous>, transform_indices = @transform_7, window_bounds = array<i64: 128, 128>}, {pipeline_mode = #tpu.pipeline_mode<synchronous>, transform_indices = @transform_8, window_bounds = array<i64: 128, 128>}, {pipeline_mode = #tpu.pipeline_mode<synchronous>, transform_indices = @transform_9, window_bounds = array<i64: 128, 64>}, {pipeline_mode = #tpu.pipeline_mode<synchronous>, transform_indices = @transform_10, window_bounds = array<i64: 128, 64>}, {pipeline_mode = #tpu.pipeline_mode<synchronous>, transform_indices = @transform_11, window_bounds = array<i64: 16, 128>}, {transform_indices = @transform_12, window_bounds = array<i64: 1, 8, 128>}]} {
    %c0 = arith.constant 0 : index
    %c0_0 = arith.constant 0 : index
    %c0_1 = arith.constant 0 : index
    %0 = vector.load %arg1[%c0, %c0_0, %c0_1] : memref<1x8x8xf32, #tpu.memory_space<vmem>>, vector<1x8x8xf32>
    %1 = vector.shape_cast %0 : vector<1x8x8xf32> to vector<8x8xf32>
    %cst = arith.constant dense<0.000000e+00> : vector<8xf32>
    %2 = vector.multi_reduction <add>, %1, %cst [1] : vector<8x8xf32> to vector<8xf32>
    %3 = vector.shape_cast %2 : vector<8xf32> to vector<8x1xf32>
    %c0_2 = arith.constant 0 : index
    %c0_3 = arith.constant 0 : index
    %c0_4 = arith.constant 0 : index
    %4 = vector.load %arg2[%c0_2, %c0_3, %c0_4] : memref<1x8x6xf32, #tpu.memory_space<vmem>>, vector<1x8x6xf32>
    %5 = vector.shape_cast %4 : vector<1x8x6xf32> to vector<8x6xf32>
    %c0_5 = arith.constant 0 : index
    %c0_6 = arith.constant 0 : index
    %c0_7 = arith.constant 0 : index
    %6 = vector.load %arg3[%c0_5, %c0_6, %c0_7] : memref<1x1x80xf32, #tpu.memory_space<vmem>>, vector<1x1x80xf32>
    %7 = vector.shape_cast %6 : vector<1x1x80xf32> to vector<1x80xf32>
    %c0_8 = arith.constant 0 : index
    %c0_9 = arith.constant 0 : index
    %8 = vector.load %arg4[%c0_8, %c0_9] : memref<6x128xf32, #tpu.memory_space<vmem>>, vector<6x128xf32>
    %cst_10 = arith.constant dense<0.000000e+00> : vector<8x128xf32>
    %9 = tpu.matmul %5, %8, %cst_10 {dimension_numbers = #tpu.dot_dimension_numbers<[1], [0], [0], [1], [0, 0, 1, 1], [], []>} : vector<8x6xf32>, vector<6x128xf32>, vector<8x128xf32> -> vector<8x128xf32>
    %c0_11 = arith.constant 0 : index
    %c0_12 = arith.constant 0 : index
    %10 = vector.load %arg12[%c0_11, %c0_12] : memref<16x128xf32, #tpu.memory_space<vmem>>, vector<1x128xf32>
    %11 = vector.broadcast %10 : vector<1x128xf32> to vector<8x128xf32>
    %12 = arith.addf %9, %11 : vector<8x128xf32>
    %c0_13 = arith.constant 0 : index
    %c0_14 = arith.constant 0 : index
    %13 = vector.load %arg5[%c0_13, %c0_14] : memref<6x128xf32, #tpu.memory_space<vmem>>, vector<6x128xf32>
    %cst_15 = arith.constant dense<0.000000e+00> : vector<8x128xf32>
    %14 = tpu.matmul %5, %13, %cst_15 {dimension_numbers = #tpu.dot_dimension_numbers<[1], [0], [0], [1], [0, 0, 1, 1], [], []>} : vector<8x6xf32>, vector<6x128xf32>, vector<8x128xf32> -> vector<8x128xf32>
    %c0_16 = arith.constant 0 : index
    %c0_17 = arith.constant 0 : index
    %15 = vector.load %arg6[%c0_16, %c0_17] : memref<80x128xf32, #tpu.memory_space<vmem>>, vector<80x128xf32>
    %cst_18 = arith.constant dense<0.000000e+00> : vector<1x128xf32>
    %16 = tpu.matmul %7, %15, %cst_18 {dimension_numbers = #tpu.dot_dimension_numbers<[1], [0], [0], [1], [0, 0, 1, 1], [], []>} : vector<1x80xf32>, vector<80x128xf32>, vector<1x128xf32> -> vector<1x128xf32>
    %c2 = arith.constant 2 : index
    %c0_19 = arith.constant 0 : index
    %17 = vector.load %arg12[%c2, %c0_19] : memref<16x128xf32, #tpu.memory_space<vmem>>, vector<1x128xf32>
    %18 = arith.addf %16, %17 : vector<1x128xf32>
    %c0_20 = arith.constant 0 : index
    %c0_21 = arith.constant 0 : index
    %19 = vector.load %arg7[%c0_20, %c0_21] : memref<80x128xf32, #tpu.memory_space<vmem>>, vector<80x128xf32>
    %cst_22 = arith.constant dense<0.000000e+00> : vector<1x128xf32>
    %20 = tpu.matmul %7, %19, %cst_22 {dimension_numbers = #tpu.dot_dimension_numbers<[1], [0], [0], [1], [0, 0, 1, 1], [], []>} : vector<1x80xf32>, vector<80x128xf32>, vector<1x128xf32> -> vector<1x128xf32>
    %c3 = arith.constant 3 : index
    %c0_23 = arith.constant 0 : index
    %21 = vector.load %arg12[%c3, %c0_23] : memref<16x128xf32, #tpu.memory_space<vmem>>, vector<1x128xf32>
    %22 = arith.addf %20, %21 : vector<1x128xf32>
    %23 = vector.shape_cast %0 : vector<1x8x8xf32> to vector<8x8xf32>
    %cst_24 = arith.constant dense<0.000000e+00> : vector<8x128xf32>
    %24 = tpu.matmul %23, %12, %cst_24 {dimension_numbers = #tpu.dot_dimension_numbers<[1], [0], [0], [1], [0, 0, 1, 1], [], []>} : vector<8x8xf32>, vector<8x128xf32>, vector<8x128xf32> -> vector<8x128xf32>
    %25 = arith.addf %24, %14 : vector<8x128xf32>
    %c1 = arith.constant 1 : index
    %c0_25 = arith.constant 0 : index
    %26 = vector.load %arg12[%c1, %c0_25] : memref<16x128xf32, #tpu.memory_space<vmem>>, vector<1x128xf32>
    %27 = vector.broadcast %26 : vector<1x128xf32> to vector<8x128xf32>
    %28 = arith.addf %25, %27 : vector<8x128xf32>
    %29 = vector.shape_cast %18 : vector<1x128xf32> to vector<1x1x128xf32>
    %30 = vector.shape_cast %29 : vector<1x1x128xf32> to vector<1x1x128xf32>
    %31 = vector.broadcast %30 : vector<1x1x128xf32> to vector<1x8x128xf32>
    %32 = vector.shape_cast %31 : vector<1x8x128xf32> to vector<8x128xf32>
    %33 = vector.shape_cast %22 : vector<1x128xf32> to vector<1x1x128xf32>
    %34 = vector.shape_cast %33 : vector<1x1x128xf32> to vector<1x1x128xf32>
    %35 = vector.broadcast %34 : vector<1x1x128xf32> to vector<1x8x128xf32>
    %36 = vector.shape_cast %35 : vector<1x8x128xf32> to vector<8x128xf32>
    %37 = vector.broadcast %3 : vector<8x1xf32> to vector<8x128xf32>
    %38 = arith.mulf %37, %32 : vector<8x128xf32>
    %39 = arith.addf %28, %38 : vector<8x128xf32>
    %40 = arith.addf %39, %36 : vector<8x128xf32>
    %c4 = arith.constant 4 : index
    %c0_26 = arith.constant 0 : index
    %41 = vector.load %arg12[%c4, %c0_26] : memref<16x128xf32, #tpu.memory_space<vmem>>, vector<1x128xf32>
    %42 = vector.broadcast %41 : vector<1x128xf32> to vector<8x128xf32>
    %43 = arith.mulf %40, %42 : vector<8x128xf32>
    %cst_27 = arith.constant dense<0.000000e+00> : vector<8xf32>
    %44 = vector.multi_reduction <add>, %43, %cst_27 [1] : vector<8x128xf32> to vector<8xf32>
    %45 = vector.shape_cast %44 : vector<8xf32> to vector<8x1xf32>
    %cst_28 = arith.constant 0.000000e+00 : f32
    %46 = vector.broadcast %cst_28 : f32 to vector<8x128xf32>
    %47 = arith.maximumf %40, %46 : vector<8x128xf32>
    %c0_29 = arith.constant 0 : index
    %c0_30 = arith.constant 0 : index
    %48 = vector.load %arg8[%c0_29, %c0_30] : memref<128x128xf32, #tpu.memory_space<vmem>>, vector<128x128xf32>
    %cst_31 = arith.constant dense<0.000000e+00> : vector<8x128xf32>
    %49 = tpu.matmul %47, %48, %cst_31 {dimension_numbers = #tpu.dot_dimension_numbers<[1], [0], [0], [1], [0, 0, 1, 1], [], []>} : vector<8x128xf32>, vector<128x128xf32>, vector<8x128xf32> -> vector<8x128xf32>
    %c0_32 = arith.constant 0 : index
    %c0_33 = arith.constant 0 : index
    %50 = vector.load %arg9[%c0_32, %c0_33] : memref<128x128xf32, #tpu.memory_space<vmem>>, vector<128x128xf32>
    %cst_34 = arith.constant dense<0.000000e+00> : vector<8x128xf32>
    %51 = tpu.matmul %47, %50, %cst_34 {dimension_numbers = #tpu.dot_dimension_numbers<[1], [0], [0], [1], [0, 0, 1, 1], [], []>} : vector<8x128xf32>, vector<128x128xf32>, vector<8x128xf32> -> vector<8x128xf32>
    %52 = vector.shape_cast %0 : vector<1x8x8xf32> to vector<8x8xf32>
    %cst_35 = arith.constant dense<0.000000e+00> : vector<8x128xf32>
    %53 = tpu.matmul %52, %49, %cst_35 {dimension_numbers = #tpu.dot_dimension_numbers<[1], [0], [0], [1], [0, 0, 1, 1], [], []>} : vector<8x8xf32>, vector<8x128xf32>, vector<8x128xf32> -> vector<8x128xf32>
    %54 = arith.addf %53, %51 : vector<8x128xf32>
    %c5 = arith.constant 5 : index
    %c0_36 = arith.constant 0 : index
    %55 = vector.load %arg12[%c5, %c0_36] : memref<16x128xf32, #tpu.memory_space<vmem>>, vector<1x128xf32>
    %56 = vector.broadcast %55 : vector<1x128xf32> to vector<8x128xf32>
    %57 = arith.addf %54, %56 : vector<8x128xf32>
    %c6 = arith.constant 6 : index
    %c0_37 = arith.constant 0 : index
    %58 = vector.load %arg12[%c6, %c0_37] : memref<16x128xf32, #tpu.memory_space<vmem>>, vector<1x128xf32>
    %59 = vector.broadcast %58 : vector<1x128xf32> to vector<8x128xf32>
    %60 = arith.mulf %57, %59 : vector<8x128xf32>
    %cst_38 = arith.constant dense<0.000000e+00> : vector<8xf32>
    %61 = vector.multi_reduction <add>, %60, %cst_38 [1] : vector<8x128xf32> to vector<8xf32>
    %62 = vector.shape_cast %61 : vector<8xf32> to vector<8x1xf32>
    %63 = arith.addf %45, %62 : vector<8x1xf32>
    %cst_39 = arith.constant 0.000000e+00 : f32
    %64 = vector.broadcast %cst_39 : f32 to vector<8x128xf32>
    %65 = arith.maximumf %57, %64 : vector<8x128xf32>
    %c0_40 = arith.constant 0 : index
    %c0_41 = arith.constant 0 : index
    %66 = vector.load %arg10[%c0_40, %c0_41] : memref<128x64xf32, #tpu.memory_space<vmem>>, vector<128x64xf32>
    %cst_42 = arith.constant dense<0.000000e+00> : vector<8x64xf32>
    %67 = tpu.matmul %65, %66, %cst_42 {dimension_numbers = #tpu.dot_dimension_numbers<[1], [0], [0], [1], [0, 0, 1, 1], [], []>} : vector<8x128xf32>, vector<128x64xf32>, vector<8x64xf32> -> vector<8x64xf32>
    %c0_43 = arith.constant 0 : index
    %c0_44 = arith.constant 0 : index
    %68 = vector.load %arg11[%c0_43, %c0_44] : memref<128x64xf32, #tpu.memory_space<vmem>>, vector<128x64xf32>
    %cst_45 = arith.constant dense<0.000000e+00> : vector<8x64xf32>
    %69 = tpu.matmul %65, %68, %cst_45 {dimension_numbers = #tpu.dot_dimension_numbers<[1], [0], [0], [1], [0, 0, 1, 1], [], []>} : vector<8x128xf32>, vector<128x64xf32>, vector<8x64xf32> -> vector<8x64xf32>
    %70 = vector.shape_cast %0 : vector<1x8x8xf32> to vector<8x8xf32>
    %cst_46 = arith.constant dense<0.000000e+00> : vector<8x64xf32>
    %71 = tpu.matmul %70, %67, %cst_46 {dimension_numbers = #tpu.dot_dimension_numbers<[1], [0], [0], [1], [0, 0, 1, 1], [], []>} : vector<8x8xf32>, vector<8x64xf32>, vector<8x64xf32> -> vector<8x64xf32>
    %72 = arith.addf %71, %69 : vector<8x64xf32>
    %c7 = arith.constant 7 : index
    %c0_47 = arith.constant 0 : index
    %73 = vector.load %arg12[%c7, %c0_47] : memref<16x128xf32, #tpu.memory_space<vmem>>, vector<1x128xf32>
    %74 = vector.extract_strided_slice %73 {offsets = [0, 0], sizes = [1, 64], strides = [1, 1]} : vector<1x128xf32> to vector<1x64xf32>
    %75 = vector.broadcast %74 : vector<1x64xf32> to vector<8x64xf32>
    %76 = arith.addf %72, %75 : vector<8x64xf32>
    %c8 = arith.constant 8 : index
    %c0_48 = arith.constant 0 : index
    %77 = vector.load %arg12[%c8, %c0_48] : memref<16x128xf32, #tpu.memory_space<vmem>>, vector<1x128xf32>
    %78 = vector.extract_strided_slice %77 {offsets = [0, 0], sizes = [1, 64], strides = [1, 1]} : vector<1x128xf32> to vector<1x64xf32>
    %79 = vector.broadcast %78 : vector<1x64xf32> to vector<8x64xf32>
    %80 = arith.mulf %76, %79 : vector<8x64xf32>
    %cst_49 = arith.constant dense<0.000000e+00> : vector<8xf32>
    %81 = vector.multi_reduction <add>, %80, %cst_49 [1] : vector<8x64xf32> to vector<8xf32>
    %82 = vector.shape_cast %81 : vector<8xf32> to vector<8x1xf32>
    %83 = arith.addf %63, %82 : vector<8x1xf32>
    %84 = vector.shape_cast %83 : vector<8x1xf32> to vector<1x8x1xf32>
    %cst_50 = arith.constant dense<0.000000e+00> : vector<1x1xf32>
    %85 = vector.multi_reduction <add>, %84, %cst_50 [1] : vector<1x8x1xf32> to vector<1x1xf32>
    %86 = vector.shape_cast %85 : vector<1x1xf32> to vector<1x1x1xf32>
    %87 = vector.shape_cast %86 : vector<1x1x1xf32> to vector<1x1x1xf32>
    %88 = vector.broadcast %87 : vector<1x1x1xf32> to vector<1x8x128xf32>
    %c0_51 = arith.constant 0 : index
    %c0_52 = arith.constant 0 : index
    %c0_53 = arith.constant 0 : index
    %89 = vector.load %arg13[%c0_51, %c0_52, %c0_53] : memref<1x8x128xf32, #tpu.memory_space<vmem>>, vector<1x8x128xf32>
    tpu.vector_store %arg13[%c0_51, %c0_52, %c0_53], %88 {strides = array<i32>} : memref<1x8x128xf32, #tpu.memory_space<vmem>>, vector<1x8x128xf32>,
    return
  }
  func.func @transform_0(%arg0: i32) -> (i32, i32, i32) {
    %c0_i32 = arith.constant 0 : i32
    %c0_i32_0 = arith.constant 0 : i32
    %c0_i32_1 = arith.constant 0 : i32
    return %arg0, %c0_i32, %c0_i32_0 : i32, i32, i32
  }
  func.func @transform_1(%arg0: i32) -> (i32, i32, i32) {
    %c0_i32 = arith.constant 0 : i32
    %c0_i32_0 = arith.constant 0 : i32
    %c0_i32_1 = arith.constant 0 : i32
    return %arg0, %c0_i32, %c0_i32_0 : i32, i32, i32
  }
  func.func @transform_2(%arg0: i32) -> (i32, i32, i32) {
    %c0_i32 = arith.constant 0 : i32
    %c0_i32_0 = arith.constant 0 : i32
    %c0_i32_1 = arith.constant 0 : i32
    return %arg0, %c0_i32, %c0_i32_0 : i32, i32, i32
  }
  func.func @transform_3(%arg0: i32) -> (i32, i32) {
    %c0_i32 = arith.constant 0 : i32
    %c0_i32_0 = arith.constant 0 : i32
    %c0_i32_1 = arith.constant 0 : i32
    return %c0_i32, %c0_i32_0 : i32, i32
  }
  func.func @transform_4(%arg0: i32) -> (i32, i32) {
    %c0_i32 = arith.constant 0 : i32
    %c0_i32_0 = arith.constant 0 : i32
    %c0_i32_1 = arith.constant 0 : i32
    return %c0_i32, %c0_i32_0 : i32, i32
  }
  func.func @transform_5(%arg0: i32) -> (i32, i32) {
    %c0_i32 = arith.constant 0 : i32
    %c0_i32_0 = arith.constant 0 : i32
    %c0_i32_1 = arith.constant 0 : i32
    return %c0_i32, %c0_i32_0 : i32, i32
  }
  func.func @transform_6(%arg0: i32) -> (i32, i32) {
    %c0_i32 = arith.constant 0 : i32
    %c0_i32_0 = arith.constant 0 : i32
    %c0_i32_1 = arith.constant 0 : i32
    return %c0_i32, %c0_i32_0 : i32, i32
  }
  func.func @transform_7(%arg0: i32) -> (i32, i32) {
    %c0_i32 = arith.constant 0 : i32
    %c0_i32_0 = arith.constant 0 : i32
    %c0_i32_1 = arith.constant 0 : i32
    return %c0_i32, %c0_i32_0 : i32, i32
  }
  func.func @transform_8(%arg0: i32) -> (i32, i32) {
    %c0_i32 = arith.constant 0 : i32
    %c0_i32_0 = arith.constant 0 : i32
    %c0_i32_1 = arith.constant 0 : i32
    return %c0_i32, %c0_i32_0 : i32, i32
  }
  func.func @transform_9(%arg0: i32) -> (i32, i32) {
    %c0_i32 = arith.constant 0 : i32
    %c0_i32_0 = arith.constant 0 : i32
    %c0_i32_1 = arith.constant 0 : i32
    return %c0_i32, %c0_i32_0 : i32, i32
  }
  func.func @transform_10(%arg0: i32) -> (i32, i32) {
    %c0_i32 = arith.constant 0 : i32
    %c0_i32_0 = arith.constant 0 : i32
    %c0_i32_1 = arith.constant 0 : i32
    return %c0_i32, %c0_i32_0 : i32, i32
  }
  func.func @transform_11(%arg0: i32) -> (i32, i32) {
    %c0_i32 = arith.constant 0 : i32
    %c0_i32_0 = arith.constant 0 : i32
    %c0_i32_1 = arith.constant 0 : i32
    return %c0_i32, %c0_i32_0 : i32, i32
  }
  func.func @transform_12(%arg0: i32) -> (i32, i32, i32) {
    %c0_i32 = arith.constant 0 : i32
    %c0_i32_0 = arith.constant 0 : i32
    %c0_i32_1 = arith.constant 0 : i32
    return %arg0, %c0_i32, %c0_i32_0 : i32, i32, i32
  }
}

</mosaic_0001>

<llo_original>
// kernel: tpu_custom_call.1
$region0: #{tpu_custom_call.1}
  #allocation0 [shape = 'u32[]', space=smem, size = 0x4, offset = 0x4, fixed_abs, tag = 'smem constant byte address 0x4 - core index']
  #allocation1 [shape = 'u32[144,128]{1,0:T(1,128)}', space=vmem, size = 0x12000, scoped, tag = 'internal scratch']
  %s0 = inlined_call_operand.hbm [shape: f32[2,8,8], index: 0, kind: input, shape index: {}]
  %s1 = inlined_call_operand.vmem [shape: f32[2,8,6], index: 1, kind: input, shape index: {}]
  %s2 = inlined_call_operand.vmem [shape: f32[2,1,80], index: 2, kind: input, shape index: {}]
  %s3 = inlined_call_operand.hbm [shape: f32[6,128], index: 3, kind: input, shape index: {}]
  %s4 = inlined_call_operand.hbm [shape: f32[6,128], index: 4, kind: input, shape index: {}]
  %s5 = inlined_call_operand.vmem [shape: f32[80,128], index: 5, kind: input, shape index: {}]
  %s6 = inlined_call_operand.vmem [shape: f32[80,128], index: 6, kind: input, shape index: {}]
  %s7 = inlined_call_operand.vmem [shape: f32[128,128], index: 7, kind: input, shape index: {}]
  %s8 = inlined_call_operand.vmem [shape: f32[128,128], index: 8, kind: input, shape index: {}]
  %s9 = inlined_call_operand.vmem [shape: f32[128,64], index: 9, kind: input, shape index: {}]
  %s10 = inlined_call_operand.vmem [shape: f32[128,64], index: 10, kind: input, shape index: {}]
  %s11 = inlined_call_operand.vmem [shape: f32[16,128], index: 11, kind: input, shape index: {}]
  %s12 = inlined_call_operand.hbm [shape: f32[2,8,128], index: 12, kind: output, shape index: {}]
  %s13 = sld [smem:[#allocation0]]
  $region93: #{tpu_custom_call.1} parent=0
    _
  %s15 = ssub.s32 1, %s13
  %s16 = scalar_select 0, %s15, %s13
  $region1: #{tpu_custom_call.1} parent=0
    #allocation2 [shape = 'u8[8192]{0}', space=vmem, size = 0x2000, scoped, tag = 'input window, operand 0']
    #allocation3 [shape = 's32[2]{0}', space=sflag, size = 0x8, scoped, tag = 'scoped memory for tpu_custom_call.1']
    #allocation4 [shape = 's32[2]{0}', space=sflag, size = 0x8, scoped, tag = 'scoped memory for tpu_custom_call.1']
    #allocation5 [shape = 'u8[4096]{0}', space=vmem, size = 0x1000, scoped, tag = 'input window, operand 3, single buffered']
    #allocation6 [shape = 's32[1]{0}', space=sflag, size = 0x4, scoped, tag = 'scoped memory for tpu_custom_call.1']
    #allocation7 [shape = 'u8[4096]{0}', space=vmem, size = 0x1000, scoped, tag = 'input window, operand 4, single buffered']
    #allocation8 [shape = 'u8[8192]{0}', space=vmem, size = 0x2000, scoped, tag = 'output window, operand 0']
    %17 = vsyncpa [#allocation3], 0
    %s18 = scalar_lea.sflag [#allocation3], 1
    %19 = vsyncpa %s18, 0
    %20 = vsyncpa [#allocation6], 0
    %21 = vsyncpa [#allocation4], 0
    %s22 = scalar_lea.sflag [#allocation4], 1
    %23 = vsyncpa %s22, 0
    loop: start=0, step=1, limit=4
    $region2: #{tpu_custom_call.1} parent=1 // loop_pre_header
      _
    $region3: #{tpu_custom_call.1} parent=1 // loop_header
      %s25 = sphi 0, %s29
      %p26 = scmp.ge.s32.totalorder %s25, 4
      %s35 = sphi 0, %s37
      %s38 = sphi 0, %s35
      %s39 = sphi 0, %s38
      %s55 = sphi 0, %s39
      %s61 = sphi 0, %s63
      %s64 = sphi 0, %s61
      %s65 = sphi 0, %s64
      %s81 = sphi 0, %s65
      %s87 = sphi 0, %s89
      %s90 = sphi 0, %s87
      %s91 = sphi 0, %s90
      %s107 = sphi 0, %s91
      %s111 = sphi 0, %s111
      %s113 = sphi 0, %s111
      %s114 = sphi 0, %s113
      %s128 = sphi 0, %s114
      %s132 = sphi 0, %s132
      %s134 = sphi 0, %s132
      %s135 = sphi 0, %s134
      %s149 = sphi 0, %s135
      %s153 = sphi 0, %s153
      %s155 = sphi 0, %s153
      %s156 = sphi 0, %s155
      %s170 = sphi 0, %s156
      %s174 = sphi 0, %s174
      %s176 = sphi 0, %s174
      %s177 = sphi 0, %s176
      %s191 = sphi 0, %s177
      %s195 = sphi 0, %s195
      %s197 = sphi 0, %s195
      %s198 = sphi 0, %s197
      %s212 = sphi 0, %s198
      %s216 = sphi 0, %s216
      %s218 = sphi 0, %s216
      %s219 = sphi 0, %s218
      %s233 = sphi 0, %s219
      %s237 = sphi 0, %s237
      %s239 = sphi 0, %s237
      %s240 = sphi 0, %s239
      %s254 = sphi 0, %s240
      %s258 = sphi 0, %s258
      %s260 = sphi 0, %s258
      %s261 = sphi 0, %s260
      %s275 = sphi 0, %s261
      %s279 = sphi 0, %s279
      %s281 = sphi 0, %s279
      %s282 = sphi 0, %s281
      %s296 = sphi 0, %s282
      %s302 = sphi 0, %s304
      %s305 = sphi 0, %s302
      %s306 = sphi 0, %s305
      %s322 = sphi 0, %s306
    $region4: #{tpu_custom_call.1} parent=1 // loop_header_branch
      %28 = sbr.rel (%p26) target = $region8
    $region5: #{tpu_custom_call.1} parent=1 // loop_body
      %s30 = ssub.s32 %s25, 1
      %s31 = ssub.s32 %s25, 2
      %s32 = sadd.s32 %s25, 1
      %s33 = ssub.s32 %s25, %s32
      %p34 = scmp.eq.s32.totalorder %s33, 0
      %s36 = sadd.s32 %s35, 1
      %s37 = scalar_select %p34, %s35, %s36
      %p40 = pneg %p34
      %p41 = scmp.eq.s32.totalorder %s25, 1
      %p42 = por %p40, %p41
      %p43 = scmp.ne.s32.totalorder %s35, %s38
      %p44 = scmp.eq.s32.totalorder %s25, 0
      %p45 = por %p43, %p44
      %p46 = scmp.ne.s32.totalorder %s35, %s38
      %p47 = scmp.eq.s32.totalorder %s30, 1
      %p48 = por %p46, %p47
      %p49 = scmp.ne.s32.totalorder %s38, %s39
      %p50 = scmp.eq.s32.totalorder %s30, 0
      %p51 = por %p49, %p50
      %p52 = scmp.ne.s32.totalorder %s38, %s39
      %p53 = scmp.eq.s32.totalorder %s31, 1
      %p54 = por %p52, %p53
      %p56 = scmp.ne.s32.totalorder %s39, %s55
      %p57 = scmp.eq.s32.totalorder %s31, 0
      %p58 = por %p56, %p57
      %s59 = ssub.s32 %s25, %s32
      %p60 = scmp.eq.s32.totalorder %s59, 0
      %s62 = sadd.s32 %s61, 1
      %s63 = scalar_select %p60, %s61, %s62
      %p66 = pneg %p60
      %p67 = scmp.eq.s32.totalorder %s25, 1
      %p68 = por %p66, %p67
      %p69 = scmp.ne.s32.totalorder %s61, %s64
      %p70 = scmp.eq.s32.totalorder %s25, 0
      %p71 = por %p69, %p70
      %p72 = scmp.ne.s32.totalorder %s61, %s64
      %p73 = scmp.eq.s32.totalorder %s30, 1
      %p74 = por %p72, %p73
      %p75 = scmp.ne.s32.totalorder %s64, %s65
      %p76 = scmp.eq.s32.totalorder %s30, 0
      %p77 = por %p75, %p76
      %p78 = scmp.ne.s32.totalorder %s64, %s65
      %p79 = scmp.eq.s32.totalorder %s31, 1
      %p80 = por %p78, %p79
      %p82 = scmp.ne.s32.totalorder %s65, %s81
      %p83 = scmp.eq.s32.totalorder %s31, 0
      %p84 = por %p82, %p83
      %s85 = ssub.s32 %s25, %s32
      %p86 = scmp.eq.s32.totalorder %s85, 0
      %s88 = sadd.s32 %s87, 1
      %s89 = scalar_select %p86, %s87, %s88
      %p92 = pneg %p86
      %p93 = scmp.eq.s32.totalorder %s25, 1
      %p94 = por %p92, %p93
      %p95 = scmp.ne.s32.totalorder %s87, %s90
      %p96 = scmp.eq.s32.totalorder %s25, 0
      %p97 = por %p95, %p96
      %p98 = scmp.ne.s32.totalorder %s87, %s90
      %p99 = scmp.eq.s32.totalorder %s30, 1
      %p100 = por %p98, %p99
      %p101 = scmp.ne.s32.totalorder %s90, %s91
      %p102 = scmp.eq.s32.totalorder %s30, 0
      %p103 = por %p101, %p102
      %p104 = scmp.ne.s32.totalorder %s90, %s91
      %p105 = scmp.eq.s32.totalorder %s31, 1
      %p106 = por %p104, %p105
      %p108 = scmp.ne.s32.totalorder %s91, %s107
      %p109 = scmp.eq.s32.totalorder %s31, 0
      %p110 = por %p108, %p109
      %s112 = sadd.s32 %s111, 1
      %p115 = scmp.eq.s32.totalorder %s25, 1
      %p116 = scmp.ne.s32.totalorder %s111, %s113
      %p117 = scmp.eq.s32.totalorder %s25, 0
      %p118 = por %p116, %p117
      %p119 = scmp.ne.s32.totalorder %s111, %s113
      %p120 = scmp.eq.s32.totalorder %s30, 1
      %p121 = por %p119, %p120
      %p122 = scmp.ne.s32.totalorder %s113, %s114
      %p123 = scmp.eq.s32.totalorder %s30, 0
      %p124 = por %p122, %p123
      %p125 = scmp.ne.s32.totalorder %s113, %s114
      %p126 = scmp.eq.s32.totalorder %s31, 1
      %p127 = por %p125, %p126
      %p129 = scmp.ne.s32.totalorder %s114, %s128
      %p130 = scmp.eq.s32.totalorder %s31, 0
      %p131 = por %p129, %p130
      %s133 = sadd.s32 %s132, 1
      %p136 = scmp.eq.s32.totalorder %s25, 1
      %p137 = scmp.ne.s32.totalorder %s132, %s134
      %p138 = scmp.eq.s32.totalorder %s25, 0
      %p139 = por %p137, %p138
      %p140 = scmp.ne.s32.totalorder %s132, %s134
      %p141 = scmp.eq.s32.totalorder %s30, 1
      %p142 = por %p140, %p141
      %p143 = scmp.ne.s32.totalorder %s134, %s135
      %p144 = scmp.eq.s32.totalorder %s30, 0
      %p145 = por %p143, %p144
      %p146 = scmp.ne.s32.totalorder %s134, %s135
      %p147 = scmp.eq.s32.totalorder %s31, 1
      %p148 = por %p146, %p147
      %p150 = scmp.ne.s32.totalorder %s135, %s149
      %p151 = scmp.eq.s32.totalorder %s31, 0
      %p152 = por %p150, %p151
      %s154 = sadd.s32 %s153, 1
      %p157 = scmp.eq.s32.totalorder %s25, 1
      %p158 = scmp.ne.s32.totalorder %s153, %s155
      %p159 = scmp.eq.s32.totalorder %s25, 0
      %p160 = por %p158, %p159
      %p161 = scmp.ne.s32.totalorder %s153, %s155
      %p162 = scmp.eq.s32.totalorder %s30, 1
      %p163 = por %p161, %p162
      %p164 = scmp.ne.s32.totalorder %s155, %s156
      %p165 = scmp.eq.s32.totalorder %s30, 0
      %p166 = por %p164, %p165
      %p167 = scmp.ne.s32.totalorder %s155, %s156
      %p168 = scmp.eq.s32.totalorder %s31, 1
      %p169 = por %p167, %p168
      %p171 = scmp.ne.s32.totalorder %s156, %s170
      %p172 = scmp.eq.s32.totalorder %s31, 0
      %p173 = por %p171, %p172
      %s175 = sadd.s32 %s174, 1
      %p178 = scmp.eq.s32.totalorder %s25, 1
      %p179 = scmp.ne.s32.totalorder %s174, %s176
      %p180 = scmp.eq.s32.totalorder %s25, 0
      %p181 = por %p179, %p180
      %p182 = scmp.ne.s32.totalorder %s174, %s176
      %p183 = scmp.eq.s32.totalorder %s30, 1
      %p184 = por %p182, %p183
      %p185 = scmp.ne.s32.totalorder %s176, %s177
      %p186 = scmp.eq.s32.totalorder %s30, 0
      %p187 = por %p185, %p186
      %p188 = scmp.ne.s32.totalorder %s176, %s177
      %p189 = scmp.eq.s32.totalorder %s31, 1
      %p190 = por %p188, %p189
      %p192 = scmp.ne.s32.totalorder %s177, %s191
      %p193 = scmp.eq.s32.totalorder %s31, 0
      %p194 = por %p192, %p193
      %s196 = sadd.s32 %s195, 1
      %p199 = scmp.eq.s32.totalorder %s25, 1
      %p200 = scmp.ne.s32.totalorder %s195, %s197
      %p201 = scmp.eq.s32.totalorder %s25, 0
      %p202 = por %p200, %p201
      %p203 = scmp.ne.s32.totalorder %s195, %s197
      %p204 = scmp.eq.s32.totalorder %s30, 1
      %p205 = por %p203, %p204
      %p206 = scmp.ne.s32.totalorder %s197, %s198
      %p207 = scmp.eq.s32.totalorder %s30, 0
      %p208 = por %p206, %p207
      %p209 = scmp.ne.s32.totalorder %s197, %s198
      %p210 = scmp.eq.s32.totalorder %s31, 1
      %p211 = por %p209, %p210
      %p213 = scmp.ne.s32.totalorder %s198, %s212
      %p214 = scmp.eq.s32.totalorder %s31, 0
      %p215 = por %p213, %p214
      %s217 = sadd.s32 %s216, 1
      %p220 = scmp.eq.s32.totalorder %s25, 1
      %p221 = scmp.ne.s32.totalorder %s216, %s218
      %p222 = scmp.eq.s32.totalorder %s25, 0
      %p223 = por %p221, %p222
      %p224 = scmp.ne.s32.totalorder %s216, %s218
      %p225 = scmp.eq.s32.totalorder %s30, 1
      %p226 = por %p224, %p225
      %p227 = scmp.ne.s32.totalorder %s218, %s219
      %p228 = scmp.eq.s32.totalorder %s30, 0
      %p229 = por %p227, %p228
      %p230 = scmp.ne.s32.totalorder %s218, %s219
      %p231 = scmp.eq.s32.totalorder %s31, 1
      %p232 = por %p230, %p231
      %p234 = scmp.ne.s32.totalorder %s219, %s233
      %p235 = scmp.eq.s32.totalorder %s31, 0
      %p236 = por %p234, %p235
      %s238 = sadd.s32 %s237, 1
      %p241 = scmp.eq.s32.totalorder %s25, 1
      %p242 = scmp.ne.s32.totalorder %s237, %s239
      %p243 = scmp.eq.s32.totalorder %s25, 0
      %p244 = por %p242, %p243
      %p245 = scmp.ne.s32.totalorder %s237, %s239
      %p246 = scmp.eq.s32.totalorder %s30, 1
      %p247 = por %p245, %p246
      %p248 = scmp.ne.s32.totalorder %s239, %s240
      %p249 = scmp.eq.s32.totalorder %s30, 0
      %p250 = por %p248, %p249
      %p251 = scmp.ne.s32.totalorder %s239, %s240
      %p252 = scmp.eq.s32.totalorder %s31, 1
      %p253 = por %p251, %p252
      %p255 = scmp.ne.s32.totalorder %s240, %s254
      %p256 = scmp.eq.s32.totalorder %s31, 0
      %p257 = por %p255, %p256
      %s259 = sadd.s32 %s258, 1
      %p262 = scmp.eq.s32.totalorder %s25, 1
      %p263 = scmp.ne.s32.totalorder %s258, %s260
      %p264 = scmp.eq.s32.totalorder %s25, 0
      %p265 = por %p263, %p264
      %p266 = scmp.ne.s32.totalorder %s258, %s260
      %p267 = scmp.eq.s32.totalorder %s30, 1
      %p268 = por %p266, %p267
      %p269 = scmp.ne.s32.totalorder %s260, %s261
      %p270 = scmp.eq.s32.totalorder %s30, 0
      %p271 = por %p269, %p270
      %p272 = scmp.ne.s32.totalorder %s260, %s261
      %p273 = scmp.eq.s32.totalorder %s31, 1
      %p274 = por %p272, %p273
      %p276 = scmp.ne.s32.totalorder %s261, %s275
      %p277 = scmp.eq.s32.totalorder %s31, 0
      %p278 = por %p276, %p277
      %s280 = sadd.s32 %s279, 1
      %p283 = scmp.eq.s32.totalorder %s25, 1
      %p284 = scmp.ne.s32.totalorder %s279, %s281
      %p285 = scmp.eq.s32.totalorder %s25, 0
      %p286 = por %p284, %p285
      %p287 = scmp.ne.s32.totalorder %s279, %s281
      %p288 = scmp.eq.s32.totalorder %s30, 1
      %p289 = por %p287, %p288
      %p290 = scmp.ne.s32.totalorder %s281, %s282
      %p291 = scmp.eq.s32.totalorder %s30, 0
      %p292 = por %p290, %p291
      %p293 = scmp.ne.s32.totalorder %s281, %s282
      %p294 = scmp.eq.s32.totalorder %s31, 1
      %p295 = por %p293, %p294
      %p297 = scmp.ne.s32.totalorder %s282, %s296
      %p298 = scmp.eq.s32.totalorder %s31, 0
      %p299 = por %p297, %p298
      %s300 = ssub.s32 %s25, %s32
      %p301 = scmp.eq.s32.totalorder %s300, 0
      %s303 = sadd.s32 %s302, 1
      %s304 = scalar_select %p301, %s302, %s303
      %p307 = pneg %p301
      %p308 = scmp.eq.s32.totalorder %s25, 1
      %p309 = por %p307, %p308
      %p310 = scmp.ne.s32.totalorder %s302, %s305
      %p311 = scmp.eq.s32.totalorder %s25, 0
      %p312 = por %p310, %p311
      %p313 = scmp.ne.s32.totalorder %s302, %s305
      %p314 = scmp.eq.s32.totalorder %s30, 1
      %p315 = por %p313, %p314
      %p316 = scmp.ne.s32.totalorder %s305, %s306
      %p317 = scmp.eq.s32.totalorder %s30, 0
      %p318 = por %p316, %p317
      %p319 = scmp.ne.s32.totalorder %s305, %s306
      %p320 = scmp.eq.s32.totalorder %s31, 1
      %p321 = por %p319, %p320
      %p323 = scmp.ne.s32.totalorder %s306, %s322
      %p324 = scmp.eq.s32.totalorder %s31, 0
      %p325 = por %p323, %p324
      %p326 = scmp.le.s32.totalorder 1, %s25
      %p327 = scmp.lt.s32.totalorder %s25, 3
      %p328 = pnand %p326, %p327
      %p329 = pneg %p328
      // Predicated region
      $region9: #{tpu_custom_call.1} parent=5 // pred_check
        _
      $region10: #{tpu_custom_call.1} parent=5 // pred_check_branch
        %331 = sbr.rel (%p328) target = $region12
      $region11: #{tpu_custom_call.1} parent=5 // pred_region
        %s332 = ssub.s32 %s25, 1
        // Predicated region
        $region13: #{tpu_custom_call.1} parent=11 // pred_check
          %p333 = pneg %p124
        $region14: #{tpu_custom_call.1} parent=11 // pred_check_branch
          %335 = sbr.rel (%p333) target = $region16
        $region15: #{tpu_custom_call.1} parent=11 // pred_region
          %s337 = ssub.s32 128, 128
          %338 = vsyncadd [#allocation6], %s337
          %s340 = sshll.u32 [#allocation5], 4
          %s341 = int_to_ptr.vmem [resolvable:$true] %s340
          %343 = dma.hbm_to_vmem [thread:$0]  %s3, 128, %s341, [#allocation6]
        $region16: #{tpu_custom_call.1} parent=11 // pred_fallthru
          _
        // Predicated region
        $region17: #{tpu_custom_call.1} parent=11 // pred_check
          %p344 = pneg %p145
        $region18: #{tpu_custom_call.1} parent=11 // pred_check_branch
          %346 = sbr.rel (%p344) target = $region20
        $region19: #{tpu_custom_call.1} parent=11 // pred_region
          %s348 = ssub.s32 128, 128
          %349 = vsyncadd [#allocation6], %s348
          %s351 = sshll.u32 [#allocation7], 4
          %s352 = int_to_ptr.vmem [resolvable:$true] %s351
          %354 = dma.hbm_to_vmem [thread:$0]  %s4, 128, %s352, [#allocation6]
        $region20: #{tpu_custom_call.1} parent=11 // pred_fallthru
          _
        // Predicated region
        $region21: #{tpu_custom_call.1} parent=11 // pred_check
          %p355 = pneg %p166
        $region22: #{tpu_custom_call.1} parent=11 // pred_check_branch
          %357 = sbr.rel (%p355) target = $region24
        $region23: #{tpu_custom_call.1} parent=11 // pred_region
          _
        $region24: #{tpu_custom_call.1} parent=11 // pred_fallthru
          _
        // Predicated region
        $region25: #{tpu_custom_call.1} parent=11 // pred_check
          %p358 = pneg %p187
        $region26: #{tpu_custom_call.1} parent=11 // pred_check_branch
          %360 = sbr.rel (%p358) target = $region28
        $region27: #{tpu_custom_call.1} parent=11 // pred_region
          _
        $region28: #{tpu_custom_call.1} parent=11 // pred_fallthru
          _
        // Predicated region
        $region29: #{tpu_custom_call.1} parent=11 // pred_check
          %p361 = pneg %p208
        $region30: #{tpu_custom_call.1} parent=11 // pred_check_branch
          %363 = sbr.rel (%p361) target = $region32
        $region31: #{tpu_custom_call.1} parent=11 // pred_region
          _
        $region32: #{tpu_custom_call.1} parent=11 // pred_fallthru
          _
        // Predicated region
        $region33: #{tpu_custom_call.1} parent=11 // pred_check
          %p364 = pneg %p229
        $region34: #{tpu_custom_call.1} parent=11 // pred_check_branch
          %366 = sbr.rel (%p364) target = $region36
        $region35: #{tpu_custom_call.1} parent=11 // pred_region
          _
        $region36: #{tpu_custom_call.1} parent=11 // pred_fallthru
          _
        // Predicated region
        $region37: #{tpu_custom_call.1} parent=11 // pred_check
          %p367 = pneg %p250
        $region38: #{tpu_custom_call.1} parent=11 // pred_check_branch
          %369 = sbr.rel (%p367) target = $region40
        $region39: #{tpu_custom_call.1} parent=11 // pred_region
          _
        $region40: #{tpu_custom_call.1} parent=11 // pred_fallthru
          _
        // Predicated region
        $region41: #{tpu_custom_call.1} parent=11 // pred_check
          %p370 = pneg %p271
        $region42: #{tpu_custom_call.1} parent=11 // pred_check_branch
          %372 = sbr.rel (%p370) target = $region44
        $region43: #{tpu_custom_call.1} parent=11 // pred_region
          _
        $region44: #{tpu_custom_call.1} parent=11 // pred_fallthru
          _
        // Predicated region
        $region45: #{tpu_custom_call.1} parent=11 // pred_check
          %p373 = pneg %p292
        $region46: #{tpu_custom_call.1} parent=11 // pred_check_branch
          %375 = sbr.rel (%p373) target = $region48
        $region47: #{tpu_custom_call.1} parent=11 // pred_region
          _
        $region48: #{tpu_custom_call.1} parent=11 // pred_fallthru
          _
      $region12: #{tpu_custom_call.1} parent=5 // pred_fallthru
        _
      %p376 = scmp.lt.s32.totalorder %s25, 2
      // Predicated region
      $region49: #{tpu_custom_call.1} parent=5 // pred_check
        %p377 = pneg %p376
      $region50: #{tpu_custom_call.1} parent=5 // pred_check_branch
        %379 = sbr.rel (%p377) target = $region52
      $region51: #{tpu_custom_call.1} parent=5 // pred_region
        // Predicated region
        $region53: #{tpu_custom_call.1} parent=51 // pred_check
          %p380 = pneg %p45
        $region54: #{tpu_custom_call.1} parent=51 // pred_check_branch
          %382 = sbr.rel (%p380) target = $region56
        $region55: #{tpu_custom_call.1} parent=51 // pred_region
          %s383 = sand.u32 %s35, 1
          %s384 = scalar_lea.sflag [#allocation3], %s383
          %s385 = sand.u32 %s35, 1
          %s386 = smul.addr %s385, 8
          %s387 = scalar_lea.vmem [#allocation2], %s386
          %s389 = ssub.s32 128, 128
          %390 = vsyncadd %s384, %s389
          %s391 = smul.addr %s25, 128
          %s392 = scalar_lea.hbm %s0, %s391
          %s394 = sshll.u32 %s387, 4
          %s395 = int_to_ptr.vmem [resolvable:$true] %s394
          %397 = dma.hbm_to_vmem [thread:$0]  %s392, 128, %s395, %s384
        $region56: #{tpu_custom_call.1} parent=51 // pred_fallthru
          _
        // Predicated region
        $region57: #{tpu_custom_call.1} parent=51 // pred_check
          %p398 = pneg %p71
        $region58: #{tpu_custom_call.1} parent=51 // pred_check_branch
          %400 = sbr.rel (%p398) target = $region60
        $region59: #{tpu_custom_call.1} parent=51 // pred_region
          %p401 = scmp.lt.s32.totalorder %s25, 1
          %s402 = scalar_select %p401, %s25, 1
          %s403 = smul.addr %s402, 8
          %s404 = scalar_lea.vmem %s1, %s403
        $region60: #{tpu_custom_call.1} parent=51 // pred_fallthru
          _
        // Predicated region
        $region61: #{tpu_custom_call.1} parent=51 // pred_check
          %p405 = pneg %p97
        $region62: #{tpu_custom_call.1} parent=51 // pred_check_branch
          %407 = sbr.rel (%p405) target = $region64
        $region63: #{tpu_custom_call.1} parent=51 // pred_region
          %p408 = scmp.lt.s32.totalorder %s25, 1
          %s409 = scalar_select %p408, %s25, 1
          %s410 = scalar_lea.vmem %s2, %s409
        $region64: #{tpu_custom_call.1} parent=51 // pred_fallthru
          _
      $region52: #{tpu_custom_call.1} parent=5 // pred_fallthru
        _
      %p411 = scmp.le.s32.totalorder 1, %s25
      %p412 = scmp.lt.s32.totalorder %s25, 3
      %p413 = pnand %p411, %p412
      %p414 = pneg %p413
      // Predicated region
      $region65: #{tpu_custom_call.1} parent=5 // pred_check
        _
      $region66: #{tpu_custom_call.1} parent=5 // pred_check_branch
        %416 = sbr.rel (%p413) target = $region68
      $region67: #{tpu_custom_call.1} parent=5 // pred_region
        %s417 = ssub.s32 %s25, 1
        %s418 = sand.u32 %s38, 1
        %s419 = scalar_lea.sflag [#allocation3], %s418
        %s420 = sand.u32 %s38, 1
        %s421 = smul.addr %s420, 8
        %s422 = scalar_lea.vmem [#allocation2], %s421
        // Predicated region
        $region69: #{tpu_custom_call.1} parent=67 // pred_check
          %p423 = pneg %p51
        $region70: #{tpu_custom_call.1} parent=67 // pred_check_branch
          %425 = sbr.rel (%p423) target = $region72
        $region71: #{tpu_custom_call.1} parent=67 // pred_region
          %426 = dma.done %s419, 128
        $region72: #{tpu_custom_call.1} parent=67 // pred_fallthru
          _
        // Predicated region
        $region73: #{tpu_custom_call.1} parent=67 // pred_check
          %p427 = pneg %p124
        $region74: #{tpu_custom_call.1} parent=67 // pred_check_branch
          %429 = sbr.rel (%p427) target = $region76
        $region75: #{tpu_custom_call.1} parent=67 // pred_region
          %430 = dma.done [#allocation6], 128
        $region76: #{tpu_custom_call.1} parent=67 // pred_fallthru
          _
        // Predicated region
        $region77: #{tpu_custom_call.1} parent=67 // pred_check
          %p431 = pneg %p145
        $region78: #{tpu_custom_call.1} parent=67 // pred_check_branch
          %433 = sbr.rel (%p431) target = $region80
        $region79: #{tpu_custom_call.1} parent=67 // pred_region
          %434 = dma.done [#allocation6], 128
        $region80: #{tpu_custom_call.1} parent=67 // pred_fallthru
          _
        %s435 = sand.u32 %s38, 1
        %s436 = scalar_lea.sflag [#allocation3], %s435
        %s437 = sand.u32 %s38, 1
        %s438 = smul.addr %s437, 8
        %s439 = scalar_lea.vmem [#allocation2], %s438
        %p440 = pneg %p51
        %p441 = pneg %p48
        %p442 = scmp.lt.s32.totalorder %s30, 1
        %s443 = scalar_select %p442, %s30, 1
        %s444 = smul.addr %s443, 8
        %s445 = scalar_lea.vmem %s1, %s444
        %p446 = pneg %p77
        %p447 = pneg %p74
        %p448 = scmp.lt.s32.totalorder %s30, 1
        %s449 = scalar_select %p448, %s30, 1
        %s450 = scalar_lea.vmem %s2, %s449
        %p451 = pneg %p103
        %p452 = pneg %p100
        %p453 = pneg %p124
        %p454 = pneg %p121
        %p455 = pneg %p145
        %p456 = pneg %p142
        %p457 = pneg %p166
        %p458 = pneg %p163
        %p459 = pneg %p187
        %p460 = pneg %p184
        %p461 = pneg %p208
        %p462 = pneg %p205
        %p463 = pneg %p229
        %p464 = pneg %p226
        %p465 = pneg %p250
        %p466 = pneg %p247
        %p467 = pneg %p271
        %p468 = pneg %p268
        %p469 = pneg %p292
        %p470 = pneg %p289
        %p471 = pneg %p318
        %p472 = pneg %p315
        %s473 = sand.u32 %s305, 1
        %s474 = scalar_lea.sflag [#allocation4], %s473
        %s475 = sand.u32 %s305, 1
        %s476 = smul.addr %s475, 8
        %s477 = scalar_lea.vmem [#allocation8], %s476
        %p478 = scmp.lt.s32.totalorder %s30, 1
        %s479 = scalar_select %p478, %s30, 1
        %s480 = smul.addr %s479, 8
        %s481 = scalar_lea.vmem %s1, %s480
        %p482 = scmp.lt.s32.totalorder %s30, 1
        %s483 = scalar_select %p482, %s30, 1
        %s484 = scalar_lea.vmem %s2, %s483
        %v485 = vld [vmem:[%s422] sm:$0xff]
        %vm486 = vcmask 64512
        %v487 = vsel %vm486, %v485, 0.0
        %488 = vadd.xlane.f32.xlu0 %v487
        %v489 = vpop.xlane.xlu0 %488
        %v490 = vld [vmem:[%s481] sm:$0xff]
        %v491 = vld [vmem:[%s484] sm:$0x1]
        %v492 = vld [vmem:[#allocation5] sm:$0x3f]
        %v493 = vld [vmem:[%s11] sm:$0x1]
        %v494 = vlaneseq
        %v495 = vshrl.u32 %v494, 7
        %v496 = vsub.s32 0, %v495
        %v497 = vrot.slane %v493, %v496
        %vm498 = vcmask 48128
        %v500 = vsel %vm498, %v490, 0
        %vm502 = vcmask 1045504
        %v504 = vsel %vm502, %v492, 0
        %506 = vmatprep.subr.mxu0 0.0
        %507 = vmatpush1.msra.mxu0 %v504
        %508 = vmatprep.subr.mxu0 0.0
        %509 = vmatpush1.msra.mxu0 0.0
        %510 = vmatprep.subr.mxu0 0.0
        %511 = vmatpush1.msra.mxu0 0.0
        %512 = vmatprep.subr.mxu0 0.0
        %513 = vmatpush1.msra.mxu0 0.0
        %514 = vmatprep.subr.mxu0 0.0
        %515 = vmatpush1.msra.mxu0 0.0
        %516 = vmatprep.subr.mxu0 0.0
        %517 = vmatpush1.msra.mxu0 0.0
        %518 = vmatprep.subr.mxu0 0.0
        %519 = vmatpush1.msra.mxu0 0.0
        %520 = vmatprep.subr.mxu0 0.0
        %521 = vmatpush1.msra.mxu0 0.0
        %522 = vmatprep.subr.mxu0 0.0
        %523 = vmatpush1.msra.mxu0 0.0
        %524 = vmatprep.subr.mxu0 0.0
        %525 = vmatpush1.msra.mxu0 0.0
        %526 = vmatprep.subr.mxu0 0.0
        %527 = vmatpush1.msra.mxu0 0.0
        %528 = vmatprep.subr.mxu0 0.0
        %529 = vmatpush1.msra.mxu0 0.0
        %530 = vmatprep.subr.mxu0 0.0
        %531 = vmatpush1.msra.mxu0 0.0
        %532 = vmatprep.subr.mxu0 0.0
        %533 = vmatpush1.msra.mxu0 0.0
        %534 = vmatprep.subr.mxu0 0.0
        %535 = vmatpush1.msra.mxu0 0.0
        %536 = vmatprep.subr.mxu0 0.0
        %537 = vmatpush1.msra.mxu0 0.0
        %538 = vmatprep.subr.mxu0 0.0
        %539 = vmatpush1.msra.mxu0 0.0
        %540 = vmatprep.subr.mxu0 0.0
        %541 = vmatpush1.msra.mxu0 0.0
        %542 = vmatprep.subr.mxu0 0.0
        %543 = vmatpush1.msra.mxu0 0.0
        %544 = vmatprep.subr.mxu0 0.0
        %545 = vmatpush1.msra.mxu0 0.0
        %546 = vmatprep.subr.mxu0 0.0
        %547 = vmatpush1.msra.mxu0 0.0
        %548 = vmatprep.subr.mxu0 0.0
        %549 = vmatpush1.msra.mxu0 0.0
        %550 = vmatprep.subr.mxu0 0.0
        %551 = vmatpush1.msra.mxu0 0.0
        %552 = vmatprep.subr.mxu0 0.0
        %553 = vmatpush1.msra.mxu0 0.0
        %554 = vmatprep.subr.mxu0 0.0
        %555 = vmatpush1.msra.mxu0 0.0
        %556 = vmatprep.subr.mxu0 0.0
        %557 = vmatpush1.msra.mxu0 0.0
        %558 = vmatprep.subr.mxu0 0.0
        %559 = vmatpush1.msra.mxu0 0.0
        %560 = vmatprep.subr.mxu0 0.0
        %561 = vmatpush1.msra.mxu0 0.0
        %562 = vmatprep.subr.mxu0 0.0
        %563 = vmatpush1.msra.mxu0 0.0
        %564 = vmatprep.subr.mxu0 0.0
        %565 = vmatpush1.msra.mxu0 0.0
        %566 = vmatprep.subr.mxu0 0.0
        %567 = vmatpush1.msra.mxu0 0.0
        %568 = vmatprep.subr.mxu0 0.0
        %569 = vmatpush1.msra.mxu0 0.0
        %570 = vmatprep.mubr.f32.mxu0 0.0
        %571 = vmatmul.mubr.f32.gmra.mrb[0].mxu0 %v500
        %v572 = vpop.f32.mrb[0].mxu0
        %v573 = vadd.f32 %v497, %v572
        %v574 = vpop.f32.mrb[0].mxu0
        %575 = vdwg.mxu0
        %v576 = vld [vmem:[#allocation7] sm:$0x3f]
        %v578 = vsel %vm502, %v576, 0
        %580 = vmatprep.subr.mxu0 0.0
        %581 = vmatpush1.msra.mxu0 %v578
        %582 = vmatprep.subr.mxu0 0.0
        %583 = vmatpush1.msra.mxu0 0.0
        %584 = vmatprep.subr.mxu0 0.0
        %585 = vmatpush1.msra.mxu0 0.0
        %586 = vmatprep.subr.mxu0 0.0
        %587 = vmatpush1.msra.mxu0 0.0
        %588 = vmatprep.subr.mxu0 0.0
        %589 = vmatpush1.msra.mxu0 0.0
        %590 = vmatprep.subr.mxu0 0.0
        %591 = vmatpush1.msra.mxu0 0.0
        %592 = vmatprep.subr.mxu0 0.0
        %593 = vmatpush1.msra.mxu0 0.0
        %594 = vmatprep.subr.mxu0 0.0
        %595 = vmatpush1.msra.mxu0 0.0
        %596 = vmatprep.subr.mxu0 0.0
        %597 = vmatpush1.msra.mxu0 0.0
        %598 = vmatprep.subr.mxu0 0.0
        %599 = vmatpush1.msra.mxu0 0.0
        %600 = vmatprep.subr.mxu0 0.0
        %601 = vmatpush1.msra.mxu0 0.0
        %602 = vmatprep.subr.mxu0 0.0
        %603 = vmatpush1.msra.mxu0 0.0
        %604 = vmatprep.subr.mxu0 0.0
        %605 = vmatpush1.msra.mxu0 0.0
        %606 = vmatprep.subr.mxu0 0.0
        %607 = vmatpush1.msra.mxu0 0.0
        %608 = vmatprep.subr.mxu0 0.0
        %609 = vmatpush1.msra.mxu0 0.0
        %610 = vmatprep.subr.mxu0 0.0
        %611 = vmatpush1.msra.mxu0 0.0
        %612 = vmatprep.subr.mxu0 0.0
        %613 = vmatpush1.msra.mxu0 0.0
        %614 = vmatprep.subr.mxu0 0.0
        %615 = vmatpush1.msra.mxu0 0.0
        %616 = vmatprep.subr.mxu0 0.0
        %617 = vmatpush1.msra.mxu0 0.0
        %618 = vmatprep.subr.mxu0 0.0
        %619 = vmatpush1.msra.mxu0 0.0
        %620 = vmatprep.subr.mxu0 0.0
        %621 = vmatpush1.msra.mxu0 0.0
        %622 = vmatprep.subr.mxu0 0.0
        %623 = vmatpush1.msra.mxu0 0.0
        %624 = vmatprep.subr.mxu0 0.0
        %625 = vmatpush1.msra.mxu0 0.0
        %626 = vmatprep.subr.mxu0 0.0
        %627 = vmatpush1.msra.mxu0 0.0
        %628 = vmatprep.subr.mxu0 0.0
        %629 = vmatpush1.msra.mxu0 0.0
        %630 = vmatprep.subr.mxu0 0.0
        %631 = vmatpush1.msra.mxu0 0.0
        %632 = vmatprep.subr.mxu0 0.0
        %633 = vmatpush1.msra.mxu0 0.0
        %634 = vmatprep.subr.mxu0 0.0
        %635 = vmatpush1.msra.mxu0 0.0
        %636 = vmatprep.subr.mxu0 0.0
        %637 = vmatpush1.msra.mxu0 0.0
        %638 = vmatprep.subr.mxu0 0.0
        %639 = vmatpush1.msra.mxu0 0.0
        %640 = vmatprep.subr.mxu0 0.0
        %641 = vmatpush1.msra.mxu0 0.0
        %642 = vmatprep.subr.mxu0 0.0
        %643 = vmatpush1.msra.mxu0 0.0
        %644 = vmatprep.mubr.f32.mxu0 0.0
        %645 = vmatmul.mubr.f32.gmra.mrb[0].mxu0 %v500
        %v646 = vpop.f32.mrb[0].mxu0
        %v647 = vadd.f32 0.0, %v646
        %v648 = vpop.f32.mrb[0].mxu0
        %649 = vdwg.mxu0
        %v650 = vld [vmem:[%s5] sm:$0xff]
        %v651 = vld [vmem:[%s5 + $0x8] sm:$0xff]
        %v652 = vld [vmem:[%s5 + $0x10] sm:$0xff]
        %v653 = vld [vmem:[%s5 + $0x18] sm:$0xff]
        %v654 = vld [vmem:[%s5 + $0x20] sm:$0xff]
        %v655 = vld [vmem:[%s5 + $0x28] sm:$0xff]
        %v656 = vld [vmem:[%s5 + $0x30] sm:$0xff]
        %v657 = vld [vmem:[%s5 + $0x38] sm:$0xff]
        %v658 = vld [vmem:[%s5 + $0x40] sm:$0xff]
        %v659 = vld [vmem:[%s5 + $0x48] sm:$0xff]
        %v660 = vld [vmem:[%s11 + $0x2] sm:$0x1]
        %vm661 = vcmask 654336
        %v663 = vsel %vm661, %v491, 0
        %665 = vmatprep.subr.mxu0 0.0
        %666 = vmatpush1.msra.mxu0 %v650
        %667 = vmatprep.subr.mxu0 0.0
        %668 = vmatpush1.msra.mxu0 %v651
        %669 = vmatprep.subr.mxu0 0.0
        %670 = vmatpush1.msra.mxu0 %v652
        %671 = vmatprep.subr.mxu0 0.0
        %672 = vmatpush1.msra.mxu0 %v653
        %673 = vmatprep.subr.mxu0 0.0
        %674 = vmatpush1.msra.mxu0 %v654
        %675 = vmatprep.subr.mxu0 0.0
        %676 = vmatpush1.msra.mxu0 %v655
        %677 = vmatprep.subr.mxu0 0.0
        %678 = vmatpush1.msra.mxu0 %v656
        %679 = vmatprep.subr.mxu0 0.0
        %680 = vmatpush1.msra.mxu0 %v657
        %681 = vmatprep.subr.mxu0 0.0
        %682 = vmatpush1.msra.mxu0 %v658
        %683 = vmatprep.subr.mxu0 0.0
        %684 = vmatpush1.msra.mxu0 %v659
        %685 = vmatprep.subr.mxu0 0.0
        %686 = vmatpush1.msra.mxu0 0.0
        %687 = vmatprep.subr.mxu0 0.0
        %688 = vmatpush1.msra.mxu0 0.0
        %689 = vmatprep.subr.mxu0 0.0
        %690 = vmatpush1.msra.mxu0 0.0
        %691 = vmatprep.subr.mxu0 0.0
        %692 = vmatpush1.msra.mxu0 0.0
        %693 = vmatprep.subr.mxu0 0.0
        %694 = vmatpush1.msra.mxu0 0.0
        %695 = vmatprep.subr.mxu0 0.0
        %696 = vmatpush1.msra.mxu0 0.0
        %697 = vmatprep.subr.mxu0 0.0
        %698 = vmatpush1.msra.mxu0 0.0
        %699 = vmatprep.subr.mxu0 0.0
        %700 = vmatpush1.msra.mxu0 0.0
        %701 = vmatprep.subr.mxu0 0.0
        %702 = vmatpush1.msra.mxu0 0.0
        %703 = vmatprep.subr.mxu0 0.0
        %704 = vmatpush1.msra.mxu0 0.0
        %705 = vmatprep.subr.mxu0 0.0
        %706 = vmatpush1.msra.mxu0 0.0
        %707 = vmatprep.subr.mxu0 0.0
        %708 = vmatpush1.msra.mxu0 0.0
        %709 = vmatprep.subr.mxu0 0.0
        %710 = vmatpush1.msra.mxu0 0.0
        %711 = vmatprep.subr.mxu0 0.0
        %712 = vmatpush1.msra.mxu0 0.0
        %713 = vmatprep.subr.mxu0 0.0
        %714 = vmatpush1.msra.mxu0 0.0
        %715 = vmatprep.subr.mxu0 0.0
        %716 = vmatpush1.msra.mxu0 0.0
        %717 = vmatprep.subr.mxu0 0.0
        %718 = vmatpush1.msra.mxu0 0.0
        %719 = vmatprep.subr.mxu0 0.0
        %720 = vmatpush1.msra.mxu0 0.0
        %721 = vmatprep.subr.mxu0 0.0
        %722 = vmatpush1.msra.mxu0 0.0
        %723 = vmatprep.subr.mxu0 0.0
        %724 = vmatpush1.msra.mxu0 0.0
        %725 = vmatprep.subr.mxu0 0.0
        %726 = vmatpush1.msra.mxu0 0.0
        %727 = vmatprep.subr.mxu0 0.0
        %728 = vmatpush1.msra.mxu0 0.0
        %729 = vmatprep.mubr.f32.mxu0 0.0
        %730 = vmatmul.mubr.f32.gmra.mrb[0].mxu0 %v663
        %v731 = vpop.f32.mrb[0].mxu0
        %v732 = vadd.f32 %v660, %v731
        %v733 = vpop.f32.mrb[0].mxu0
        %734 = vdwg.mxu0
        %v735 = vld [vmem:[%s6] sm:$0xff]
        %v736 = vld [vmem:[%s6 + $0x8] sm:$0xff]
        %v737 = vld [vmem:[%s6 + $0x10] sm:$0xff]
        %v738 = vld [vmem:[%s6 + $0x18] sm:$0xff]
        %v739 = vld [vmem:[%s6 + $0x20] sm:$0xff]
        %v740 = vld [vmem:[%s6 + $0x28] sm:$0xff]
        %v741 = vld [vmem:[%s6 + $0x30] sm:$0xff]
        %v742 = vld [vmem:[%s6 + $0x38] sm:$0xff]
        %v743 = vld [vmem:[%s6 + $0x40] sm:$0xff]
        %v744 = vld [vmem:[%s6 + $0x48] sm:$0xff]
        %v745 = vld [vmem:[%s11 + $0x3] sm:$0x1]
        %746 = vmatprep.subr.mxu0 0.0
        %747 = vmatpush1.msra.mxu0 %v735
        %748 = vmatprep.subr.mxu0 0.0
        %749 = vmatpush1.msra.mxu0 %v736
        %750 = vmatprep.subr.mxu0 0.0
        %751 = vmatpush1.msra.mxu0 %v737
        %752 = vmatprep.subr.mxu0 0.0
        %753 = vmatpush1.msra.mxu0 %v738
        %754 = vmatprep.subr.mxu0 0.0
        %755 = vmatpush1.msra.mxu0 %v739
        %756 = vmatprep.subr.mxu0 0.0
        %757 = vmatpush1.msra.mxu0 %v740
        %758 = vmatprep.subr.mxu0 0.0
        %759 = vmatpush1.msra.mxu0 %v741
        %760 = vmatprep.subr.mxu0 0.0
        %761 = vmatpush1.msra.mxu0 %v742
        %762 = vmatprep.subr.mxu0 0.0
        %763 = vmatpush1.msra.mxu0 %v743
        %764 = vmatprep.subr.mxu0 0.0
        %765 = vmatpush1.msra.mxu0 %v744
        %766 = vmatprep.subr.mxu0 0.0
        %767 = vmatpush1.msra.mxu0 0.0
        %768 = vmatprep.subr.mxu0 0.0
        %769 = vmatpush1.msra.mxu0 0.0
        %770 = vmatprep.subr.mxu0 0.0
        %771 = vmatpush1.msra.mxu0 0.0
        %772 = vmatprep.subr.mxu0 0.0
        %773 = vmatpush1.msra.mxu0 0.0
        %774 = vmatprep.subr.mxu0 0.0
        %775 = vmatpush1.msra.mxu0 0.0
        %776 = vmatprep.subr.mxu0 0.0
        %777 = vmatpush1.msra.mxu0 0.0
        %778 = vmatprep.subr.mxu0 0.0
        %779 = vmatpush1.msra.mxu0 0.0
        %780 = vmatprep.subr.mxu0 0.0
        %781 = vmatpush1.msra.mxu0 0.0
        %782 = vmatprep.subr.mxu0 0.0
        %783 = vmatpush1.msra.mxu0 0.0
        %784 = vmatprep.subr.mxu0 0.0
        %785 = vmatpush1.msra.mxu0 0.0
        %786 = vmatprep.subr.mxu0 0.0
        %787 = vmatpush1.msra.mxu0 0.0
        %788 = vmatprep.subr.mxu0 0.0
        %789 = vmatpush1.msra.mxu0 0.0
        %790 = vmatprep.subr.mxu0 0.0
        %791 = vmatpush1.msra.mxu0 0.0
        %792 = vmatprep.subr.mxu0 0.0
        %793 = vmatpush1.msra.mxu0 0.0
        %794 = vmatprep.subr.mxu0 0.0
        %795 = vmatpush1.msra.mxu0 0.0
        %796 = vmatprep.subr.mxu0 0.0
        %797 = vmatpush1.msra.mxu0 0.0
        %798 = vmatprep.subr.mxu0 0.0
        %799 = vmatpush1.msra.mxu0 0.0
        %800 = vmatprep.subr.mxu0 0.0
        %801 = vmatpush1.msra.mxu0 0.0
        %802 = vmatprep.subr.mxu0 0.0
        %803 = vmatpush1.msra.mxu0 0.0
        %804 = vmatprep.subr.mxu0 0.0
        %805 = vmatpush1.msra.mxu0 0.0
        %806 = vmatprep.subr.mxu0 0.0
        %807 = vmatpush1.msra.mxu0 0.0
        %808 = vmatprep.subr.mxu0 0.0
        %809 = vmatpush1.msra.mxu0 0.0
        %810 = vmatprep.mubr.f32.mxu0 0.0
        %811 = vmatmul.mubr.f32.gmra.mrb[0].mxu0 %v663
        %v812 = vpop.f32.mrb[0].mxu0
        %v813 = vadd.f32 %v745, %v812
        %v814 = vpop.f32.mrb[0].mxu0
        %815 = vdwg.mxu0
        %v817 = vsel %vm486, %v485, 0
        %819 = vmatprep.subr.mxu0 0.0
        %820 = vmatpush1.msra.mxu0 %v573
        %821 = vmatprep.subr.mxu0 0.0
        %822 = vmatpush1.msra.mxu0 0.0
        %823 = vmatprep.subr.mxu0 0.0
        %824 = vmatpush1.msra.mxu0 0.0
        %825 = vmatprep.subr.mxu0 0.0
        %826 = vmatpush1.msra.mxu0 0.0
        %827 = vmatprep.subr.mxu0 0.0
        %828 = vmatpush1.msra.mxu0 0.0
        %829 = vmatprep.subr.mxu0 0.0
        %830 = vmatpush1.msra.mxu0 0.0
        %831 = vmatprep.subr.mxu0 0.0
        %832 = vmatpush1.msra.mxu0 0.0
        %833 = vmatprep.subr.mxu0 0.0
        %834 = vmatpush1.msra.mxu0 0.0
        %835 = vmatprep.subr.mxu0 0.0
        %836 = vmatpush1.msra.mxu0 0.0
        %837 = vmatprep.subr.mxu0 0.0
        %838 = vmatpush1.msra.mxu0 0.0
        %839 = vmatprep.subr.mxu0 0.0
        %840 = vmatpush1.msra.mxu0 0.0
        %841 = vmatprep.subr.mxu0 0.0
        %842 = vmatpush1.msra.mxu0 0.0
        %843 = vmatprep.subr.mxu0 0.0
        %844 = vmatpush1.msra.mxu0 0.0
        %845 = vmatprep.subr.mxu0 0.0
        %846 = vmatpush1.msra.mxu0 0.0
        %847 = vmatprep.subr.mxu0 0.0
        %848 = vmatpush1.msra.mxu0 0.0
        %849 = vmatprep.subr.mxu0 0.0
        %850 = vmatpush1.msra.mxu0 0.0
        %851 = vmatprep.subr.mxu0 0.0
        %852 = vmatpush1.msra.mxu0 0.0
        %853 = vmatprep.subr.mxu0 0.0
        %854 = vmatpush1.msra.mxu0 0.0
        %855 = vmatprep.subr.mxu0 0.0
        %856 = vmatpush1.msra.mxu0 0.0
        %857 = vmatprep.subr.mxu0 0.0
        %858 = vmatpush1.msra.mxu0 0.0
        %859 = vmatprep.subr.mxu0 0.0
        %860 = vmatpush1.msra.mxu0 0.0
        %861 = vmatprep.subr.mxu0 0.0
        %862 = vmatpush1.msra.mxu0 0.0
        %863 = vmatprep.subr.mxu0 0.0
        %864 = vmatpush1.msra.mxu0 0.0
        %865 = vmatprep.subr.mxu0 0.0
        %866 = vmatpush1.msra.mxu0 0.0
        %867 = vmatprep.subr.mxu0 0.0
        %868 = vmatpush1.msra.mxu0 0.0
        %869 = vmatprep.subr.mxu0 0.0
        %870 = vmatpush1.msra.mxu0 0.0
        %871 = vmatprep.subr.mxu0 0.0
        %872 = vmatpush1.msra.mxu0 0.0
        %873 = vmatprep.subr.mxu0 0.0
        %874 = vmatpush1.msra.mxu0 0.0
        %875 = vmatprep.subr.mxu0 0.0
        %876 = vmatpush1.msra.mxu0 0.0
        %877 = vmatprep.subr.mxu0 0.0
        %878 = vmatpush1.msra.mxu0 0.0
        %879 = vmatprep.subr.mxu0 0.0
        %880 = vmatpush1.msra.mxu0 0.0
        %881 = vmatprep.subr.mxu0 0.0
        %882 = vmatpush1.msra.mxu0 0.0
        %883 = vmatprep.mubr.f32.mxu0 0.0
        %884 = vmatmul.mubr.f32.gmra.mrb[0].mxu0 %v817
        %v885 = vpop.f32.mrb[0].mxu0
        %v886 = vadd.f32 %v647, %v885
        %v887 = vpop.f32.mrb[0].mxu0
        %888 = vdwg.mxu0
        %v889 = vld [vmem:[%s11 + $0x1] sm:$0x1]
        %v890 = vlaneseq
        %v891 = vshrl.u32 %v890, 7
        %v892 = vsub.s32 0, %v891
        %v893 = vrot.slane %v889, %v892
        %v894 = vadd.f32 %v886, %v893
        %v895 = vlaneseq
        %v896 = vshrl.u32 %v895, 7
        %v897 = vsub.s32 0, %v896
        %v898 = vrot.slane %v732, %v897
        %v899 = vlaneseq
        %v900 = vshrl.u32 %v899, 7
        %v901 = vsub.s32 0, %v900
        %v902 = vrot.slane %v813, %v901
        %v903 = vmul.f32 %v489, %v898
        %v904 = vadd.f32 %v894, %v903
        %v905 = vadd.f32 %v904, %v902
        %v906 = vld [vmem:[%s11 + $0x4] sm:$0x1]
        %v907 = vlaneseq
        %v908 = vshrl.u32 %v907, 7
        %v909 = vsub.s32 0, %v908
        %v910 = vrot.slane %v906, %v909
        %v911 = vmul.f32 %v905, %v910
        %912 = vadd.xlane.f32.xlu0 %v911
        %v913 = vpop.xlane.xlu0 %912
        %v914 = vmax.f32 %v905, 0.0
        %v915 = vld [vmem:[%s7] sm:$0xff]
        %v916 = vld [vmem:[%s7 + $0x8] sm:$0xff]
        %v917 = vld [vmem:[%s7 + $0x10] sm:$0xff]
        %v918 = vld [vmem:[%s7 + $0x18] sm:$0xff]
        %v919 = vld [vmem:[%s7 + $0x20] sm:$0xff]
        %v920 = vld [vmem:[%s7 + $0x28] sm:$0xff]
        %v921 = vld [vmem:[%s7 + $0x30] sm:$0xff]
        %v922 = vld [vmem:[%s7 + $0x38] sm:$0xff]
        %v923 = vld [vmem:[%s7 + $0x40] sm:$0xff]
        %v924 = vld [vmem:[%s7 + $0x48] sm:$0xff]
        %v925 = vld [vmem:[%s7 + $0x50] sm:$0xff]
        %v926 = vld [vmem:[%s7 + $0x58] sm:$0xff]
        %v927 = vld [vmem:[%s7 + $0x60] sm:$0xff]
        %v928 = vld [vmem:[%s7 + $0x68] sm:$0xff]
        %v929 = vld [vmem:[%s7 + $0x70] sm:$0xff]
        %v930 = vld [vmem:[%s7 + $0x78] sm:$0xff]
        %931 = vmatprep.subr.mxu0 0.0
        %932 = vmatpush1.msra.mxu0 %v915
        %933 = vmatprep.subr.mxu0 0.0
        %934 = vmatpush1.msra.mxu0 %v916
        %935 = vmatprep.subr.mxu0 0.0
        %936 = vmatpush1.msra.mxu0 %v917
        %937 = vmatprep.subr.mxu0 0.0
        %938 = vmatpush1.msra.mxu0 %v918
        %939 = vmatprep.subr.mxu0 0.0
        %940 = vmatpush1.msra.mxu0 %v919
        %941 = vmatprep.subr.mxu0 0.0
        %942 = vmatpush1.msra.mxu0 %v920
        %943 = vmatprep.subr.mxu0 0.0
        %944 = vmatpush1.msra.mxu0 %v921
        %945 = vmatprep.subr.mxu0 0.0
        %946 = vmatpush1.msra.mxu0 %v922
        %947 = vmatprep.subr.mxu0 0.0
        %948 = vmatpush1.msra.mxu0 %v923
        %949 = vmatprep.subr.mxu0 0.0
        %950 = vmatpush1.msra.mxu0 %v924
        %951 = vmatprep.subr.mxu0 0.0
        %952 = vmatpush1.msra.mxu0 %v925
        %953 = vmatprep.subr.mxu0 0.0
        %954 = vmatpush1.msra.mxu0 %v926
        %955 = vmatprep.subr.mxu0 0.0
        %956 = vmatpush1.msra.mxu0 %v927
        %957 = vmatprep.subr.mxu0 0.0
        %958 = vmatpush1.msra.mxu0 %v928
        %959 = vmatprep.subr.mxu0 0.0
        %960 = vmatpush1.msra.mxu0 %v929
        %961 = vmatprep.subr.mxu0 0.0
        %962 = vmatpush1.msra.mxu0 %v930
        %963 = vmatprep.subr.mxu0 0.0
        %964 = vmatpush1.msra.mxu0 0.0
        %965 = vmatprep.subr.mxu0 0.0
        %966 = vmatpush1.msra.mxu0 0.0
        %967 = vmatprep.subr.mxu0 0.0
        %968 = vmatpush1.msra.mxu0 0.0
        %969 = vmatprep.subr.mxu0 0.0
        %970 = vmatpush1.msra.mxu0 0.0
        %971 = vmatprep.subr.mxu0 0.0
        %972 = vmatpush1.msra.mxu0 0.0
        %973 = vmatprep.subr.mxu0 0.0
        %974 = vmatpush1.msra.mxu0 0.0
        %975 = vmatprep.subr.mxu0 0.0
        %976 = vmatpush1.msra.mxu0 0.0
        %977 = vmatprep.subr.mxu0 0.0
        %978 = vmatpush1.msra.mxu0 0.0
        %979 = vmatprep.subr.mxu0 0.0
        %980 = vmatpush1.msra.mxu0 0.0
        %981 = vmatprep.subr.mxu0 0.0
        %982 = vmatpush1.msra.mxu0 0.0
        %983 = vmatprep.subr.mxu0 0.0
        %984 = vmatpush1.msra.mxu0 0.0
        %985 = vmatprep.subr.mxu0 0.0
        %986 = vmatpush1.msra.mxu0 0.0
        %987 = vmatprep.subr.mxu0 0.0
        %988 = vmatpush1.msra.mxu0 0.0
        %989 = vmatprep.subr.mxu0 0.0
        %990 = vmatpush1.msra.mxu0 0.0
        %991 = vmatprep.subr.mxu0 0.0
        %992 = vmatpush1.msra.mxu0 0.0
        %993 = vmatprep.subr.mxu0 0.0
        %994 = vmatpush1.msra.mxu0 0.0
        %995 = vmatprep.mubr.f32.mxu0 0.0
        %996 = vmatmul.mubr.f32.gmra.mrb[0].mxu0 %v914
        %v997 = vpop.f32.mrb[0].mxu0
        %v998 = vadd.f32 0.0, %v997
        %v999 = vpop.f32.mrb[0].mxu0
        %1000 = vdwg.mxu0
        %v1001 = vld [vmem:[%s8] sm:$0xff]
        %v1002 = vld [vmem:[%s8 + $0x8] sm:$0xff]
        %v1003 = vld [vmem:[%s8 + $0x10] sm:$0xff]
        %v1004 = vld [vmem:[%s8 + $0x18] sm:$0xff]
        %v1005 = vld [vmem:[%s8 + $0x20] sm:$0xff]
        %v1006 = vld [vmem:[%s8 + $0x28] sm:$0xff]
        %v1007 = vld [vmem:[%s8 + $0x30] sm:$0xff]
        %v1008 = vld [vmem:[%s8 + $0x38] sm:$0xff]
        %v1009 = vld [vmem:[%s8 + $0x40] sm:$0xff]
        %v1010 = vld [vmem:[%s8 + $0x48] sm:$0xff]
        %v1011 = vld [vmem:[%s8 + $0x50] sm:$0xff]
        %v1012 = vld [vmem:[%s8 + $0x58] sm:$0xff]
        %v1013 = vld [vmem:[%s8 + $0x60] sm:$0xff]
        %v1014 = vld [vmem:[%s8 + $0x68] sm:$0xff]
        %v1015 = vld [vmem:[%s8 + $0x70] sm:$0xff]
        %v1016 = vld [vmem:[%s8 + $0x78] sm:$0xff]
        %1017 = vmatprep.subr.mxu0 0.0
        %1018 = vmatpush1.msra.mxu0 %v1001
        %1019 = vmatprep.subr.mxu0 0.0
        %1020 = vmatpush1.msra.mxu0 %v1002
        %1021 = vmatprep.subr.mxu0 0.0
        %1022 = vmatpush1.msra.mxu0 %v1003
        %1023 = vmatprep.subr.mxu0 0.0
        %1024 = vmatpush1.msra.mxu0 %v1004
        %1025 = vmatprep.subr.mxu0 0.0
        %1026 = vmatpush1.msra.mxu0 %v1005
        %1027 = vmatprep.subr.mxu0 0.0
        %1028 = vmatpush1.msra.mxu0 %v1006
        %1029 = vmatprep.subr.mxu0 0.0
        %1030 = vmatpush1.msra.mxu0 %v1007
        %1031 = vmatprep.subr.mxu0 0.0
        %1032 = vmatpush1.msra.mxu0 %v1008
        %1033 = vmatprep.subr.mxu0 0.0
        %1034 = vmatpush1.msra.mxu0 %v1009
        %1035 = vmatprep.subr.mxu0 0.0
        %1036 = vmatpush1.msra.mxu0 %v1010
        %1037 = vmatprep.subr.mxu0 0.0
        %1038 = vmatpush1.msra.mxu0 %v1011
        %1039 = vmatprep.subr.mxu0 0.0
        %1040 = vmatpush1.msra.mxu0 %v1012
        %1041 = vmatprep.subr.mxu0 0.0
        %1042 = vmatpush1.msra.mxu0 %v1013
        %1043 = vmatprep.subr.mxu0 0.0
        %1044 = vmatpush1.msra.mxu0 %v1014
        %1045 = vmatprep.subr.mxu0 0.0
        %1046 = vmatpush1.msra.mxu0 %v1015
        %1047 = vmatprep.subr.mxu0 0.0
        %1048 = vmatpush1.msra.mxu0 %v1016
        %1049 = vmatprep.subr.mxu0 0.0
        %1050 = vmatpush1.msra.mxu0 0.0
        %1051 = vmatprep.subr.mxu0 0.0
        %1052 = vmatpush1.msra.mxu0 0.0
        %1053 = vmatprep.subr.mxu0 0.0
        %1054 = vmatpush1.msra.mxu0 0.0
        %1055 = vmatprep.subr.mxu0 0.0
        %1056 = vmatpush1.msra.mxu0 0.0
        %1057 = vmatprep.subr.mxu0 0.0
        %1058 = vmatpush1.msra.mxu0 0.0
        %1059 = vmatprep.subr.mxu0 0.0
        %1060 = vmatpush1.msra.mxu0 0.0
        %1061 = vmatprep.subr.mxu0 0.0
        %1062 = vmatpush1.msra.mxu0 0.0
        %1063 = vmatprep.subr.mxu0 0.0
        %1064 = vmatpush1.msra.mxu0 0.0
        %1065 = vmatprep.subr.mxu0 0.0
        %1066 = vmatpush1.msra.mxu0 0.0
        %1067 = vmatprep.subr.mxu0 0.0
        %1068 = vmatpush1.msra.mxu0 0.0
        %1069 = vmatprep.subr.mxu0 0.0
        %1070 = vmatpush1.msra.mxu0 0.0
        %1071 = vmatprep.subr.mxu0 0.0
        %1072 = vmatpush1.msra.mxu0 0.0
        %1073 = vmatprep.subr.mxu0 0.0
        %1074 = vmatpush1.msra.mxu0 0.0
        %1075 = vmatprep.subr.mxu0 0.0
        %1076 = vmatpush1.msra.mxu0 0.0
        %1077 = vmatprep.subr.mxu0 0.0
        %1078 = vmatpush1.msra.mxu0 0.0
        %1079 = vmatprep.subr.mxu0 0.0
        %1080 = vmatpush1.msra.mxu0 0.0
        %1081 = vmatprep.mubr.f32.mxu0 0.0
        %1082 = vmatmul.mubr.f32.gmra.mrb[0].mxu0 %v914
        %v1083 = vpop.f32.mrb[0].mxu0
        %v1084 = vadd.f32 0.0, %v1083
        %v1085 = vpop.f32.mrb[0].mxu0
        %1086 = vdwg.mxu0
        %1087 = vmatprep.subr.mxu0 0.0
        %1088 = vmatpush1.msra.mxu0 %v998
        %1089 = vmatprep.subr.mxu0 0.0
        %1090 = vmatpush1.msra.mxu0 0.0
        %1091 = vmatprep.subr.mxu0 0.0
        %1092 = vmatpush1.msra.mxu0 0.0
        %1093 = vmatprep.subr.mxu0 0.0
        %1094 = vmatpush1.msra.mxu0 0.0
        %1095 = vmatprep.subr.mxu0 0.0
        %1096 = vmatpush1.msra.mxu0 0.0
        %1097 = vmatprep.subr.mxu0 0.0
        %1098 = vmatpush1.msra.mxu0 0.0
        %1099 = vmatprep.subr.mxu0 0.0
        %1100 = vmatpush1.msra.mxu0 0.0
        %1101 = vmatprep.subr.mxu0 0.0
        %1102 = vmatpush1.msra.mxu0 0.0
        %1103 = vmatprep.subr.mxu0 0.0
        %1104 = vmatpush1.msra.mxu0 0.0
        %1105 = vmatprep.subr.mxu0 0.0
        %1106 = vmatpush1.msra.mxu0 0.0
        %1107 = vmatprep.subr.mxu0 0.0
        %1108 = vmatpush1.msra.mxu0 0.0
        %1109 = vmatprep.subr.mxu0 0.0
        %1110 = vmatpush1.msra.mxu0 0.0
        %1111 = vmatprep.subr.mxu0 0.0
        %1112 = vmatpush1.msra.mxu0 0.0
        %1113 = vmatprep.subr.mxu0 0.0
        %1114 = vmatpush1.msra.mxu0 0.0
        %1115 = vmatprep.subr.mxu0 0.0
        %1116 = vmatpush1.msra.mxu0 0.0
        %1117 = vmatprep.subr.mxu0 0.0
        %1118 = vmatpush1.msra.mxu0 0.0
        %1119 = vmatprep.subr.mxu0 0.0
        %1120 = vmatpush1.msra.mxu0 0.0
        %1121 = vmatprep.subr.mxu0 0.0
        %1122 = vmatpush1.msra.mxu0 0.0
        %1123 = vmatprep.subr.mxu0 0.0
        %1124 = vmatpush1.msra.mxu0 0.0
        %1125 = vmatprep.subr.mxu0 0.0
        %1126 = vmatpush1.msra.mxu0 0.0
        %1127 = vmatprep.subr.mxu0 0.0
        %1128 = vmatpush1.msra.mxu0 0.0
        %1129 = vmatprep.subr.mxu0 0.0
        %1130 = vmatpush1.msra.mxu0 0.0
        %1131 = vmatprep.subr.mxu0 0.0
        %1132 = vmatpush1.msra.mxu0 0.0
        %1133 = vmatprep.subr.mxu0 0.0
        %1134 = vmatpush1.msra.mxu0 0.0
        %1135 = vmatprep.subr.mxu0 0.0
        %1136 = vmatpush1.msra.mxu0 0.0
        %1137 = vmatprep.subr.mxu0 0.0
        %1138 = vmatpush1.msra.mxu0 0.0
        %1139 = vmatprep.subr.mxu0 0.0
        %1140 = vmatpush1.msra.mxu0 0.0
        %1141 = vmatprep.subr.mxu0 0.0
        %1142 = vmatpush1.msra.mxu0 0.0
        %1143 = vmatprep.subr.mxu0 0.0
        %1144 = vmatpush1.msra.mxu0 0.0
        %1145 = vmatprep.subr.mxu0 0.0
        %1146 = vmatpush1.msra.mxu0 0.0
        %1147 = vmatprep.subr.mxu0 0.0
        %1148 = vmatpush1.msra.mxu0 0.0
        %1149 = vmatprep.subr.mxu0 0.0
        %1150 = vmatpush1.msra.mxu0 0.0
        %1151 = vmatprep.mubr.f32.mxu0 0.0
        %1152 = vmatmul.mubr.f32.gmra.mrb[0].mxu0 %v817
        %v1153 = vpop.f32.mrb[0].mxu0
        %v1154 = vadd.f32 %v1084, %v1153
        %v1155 = vpop.f32.mrb[0].mxu0
        %1156 = vdwg.mxu0
        %v1157 = vld [vmem:[%s11 + $0x5] sm:$0x1]
        %v1158 = vlaneseq
        %v1159 = vshrl.u32 %v1158, 7
        %v1160 = vsub.s32 0, %v1159
        %v1161 = vrot.slane %v1157, %v1160
        %v1162 = vadd.f32 %v1154, %v1161
        %v1163 = vld [vmem:[%s11 + $0x6] sm:$0x1]
        %v1164 = vlaneseq
        %v1165 = vshrl.u32 %v1164, 7
        %v1166 = vsub.s32 0, %v1165
        %v1167 = vrot.slane %v1163, %v1166
        %v1168 = vmul.f32 %v1162, %v1167
        %1169 = vadd.xlane.f32.xlu0 %v1168
        %v1170 = vpop.xlane.xlu0 %1169
        %v1171 = vadd.f32 %v913, %v1170
        %v1172 = vmax.f32 %v1162, 0.0
        %v1173 = vld [vmem:[%s9] sm:$0xff]
        %v1174 = vld [vmem:[%s9 + $0x8] sm:$0xff]
        %v1175 = vld [vmem:[%s9 + $0x10] sm:$0xff]
        %v1176 = vld [vmem:[%s9 + $0x18] sm:$0xff]
        %v1177 = vld [vmem:[%s9 + $0x20] sm:$0xff]
        %v1178 = vld [vmem:[%s9 + $0x28] sm:$0xff]
        %v1179 = vld [vmem:[%s9 + $0x30] sm:$0xff]
        %v1180 = vld [vmem:[%s9 + $0x38] sm:$0xff]
        %v1181 = vld [vmem:[%s9 + $0x40] sm:$0xff]
        %v1182 = vld [vmem:[%s9 + $0x48] sm:$0xff]
        %v1183 = vld [vmem:[%s9 + $0x50] sm:$0xff]
        %v1184 = vld [vmem:[%s9 + $0x58] sm:$0xff]
        %v1185 = vld [vmem:[%s9 + $0x60] sm:$0xff]
        %v1186 = vld [vmem:[%s9 + $0x68] sm:$0xff]
        %v1187 = vld [vmem:[%s9 + $0x70] sm:$0xff]
        %v1188 = vld [vmem:[%s9 + $0x78] sm:$0xff]
        %1189 = vmatprep.subr.mxu0 0.0
        %1190 = vmatpush1.msra.mxu0 %v1173
        %1191 = vmatprep.subr.mxu0 0.0
        %1192 = vmatpush1.msra.mxu0 %v1174
        %1193 = vmatprep.subr.mxu0 0.0
        %1194 = vmatpush1.msra.mxu0 %v1175
        %1195 = vmatprep.subr.mxu0 0.0
        %1196 = vmatpush1.msra.mxu0 %v1176
        %1197 = vmatprep.subr.mxu0 0.0
        %1198 = vmatpush1.msra.mxu0 %v1177
        %1199 = vmatprep.subr.mxu0 0.0
        %1200 = vmatpush1.msra.mxu0 %v1178
        %1201 = vmatprep.subr.mxu0 0.0
        %1202 = vmatpush1.msra.mxu0 %v1179
        %1203 = vmatprep.subr.mxu0 0.0
        %1204 = vmatpush1.msra.mxu0 %v1180
        %1205 = vmatprep.subr.mxu0 0.0
        %1206 = vmatpush1.msra.mxu0 %v1181
        %1207 = vmatprep.subr.mxu0 0.0
        %1208 = vmatpush1.msra.mxu0 %v1182
        %1209 = vmatprep.subr.mxu0 0.0
        %1210 = vmatpush1.msra.mxu0 %v1183
        %1211 = vmatprep.subr.mxu0 0.0
        %1212 = vmatpush1.msra.mxu0 %v1184
        %1213 = vmatprep.subr.mxu0 0.0
        %1214 = vmatpush1.msra.mxu0 %v1185
        %1215 = vmatprep.subr.mxu0 0.0
        %1216 = vmatpush1.msra.mxu0 %v1186
        %1217 = vmatprep.subr.mxu0 0.0
        %1218 = vmatpush1.msra.mxu0 %v1187
        %1219 = vmatprep.subr.mxu0 0.0
        %1220 = vmatpush1.msra.mxu0 %v1188
        %1221 = vmatprep.subr.mxu0 0.0
        %1222 = vmatpush1.msra.mxu0 0.0
        %1223 = vmatprep.subr.mxu0 0.0
        %1224 = vmatpush1.msra.mxu0 0.0
        %1225 = vmatprep.subr.mxu0 0.0
        %1226 = vmatpush1.msra.mxu0 0.0
        %1227 = vmatprep.subr.mxu0 0.0
        %1228 = vmatpush1.msra.mxu0 0.0
        %1229 = vmatprep.subr.mxu0 0.0
        %1230 = vmatpush1.msra.mxu0 0.0
        %1231 = vmatprep.subr.mxu0 0.0
        %1232 = vmatpush1.msra.mxu0 0.0
        %1233 = vmatprep.subr.mxu0 0.0
        %1234 = vmatpush1.msra.mxu0 0.0
        %1235 = vmatprep.subr.mxu0 0.0
        %1236 = vmatpush1.msra.mxu0 0.0
        %1237 = vmatprep.subr.mxu0 0.0
        %1238 = vmatpush1.msra.mxu0 0.0
        %1239 = vmatprep.subr.mxu0 0.0
        %1240 = vmatpush1.msra.mxu0 0.0
        %1241 = vmatprep.subr.mxu0 0.0
        %1242 = vmatpush1.msra.mxu0 0.0
        %1243 = vmatprep.subr.mxu0 0.0
        %1244 = vmatpush1.msra.mxu0 0.0
        %1245 = vmatprep.subr.mxu0 0.0
        %1246 = vmatpush1.msra.mxu0 0.0
        %1247 = vmatprep.subr.mxu0 0.0
        %1248 = vmatpush1.msra.mxu0 0.0
        %1249 = vmatprep.subr.mxu0 0.0
        %1250 = vmatpush1.msra.mxu0 0.0
        %1251 = vmatprep.subr.mxu0 0.0
        %1252 = vmatpush1.msra.mxu0 0.0
        %1253 = vmatprep.mubr.f32.mxu0 0.0
        %1254 = vmatmul.mubr.f32.gmra.mrb[0].mxu0 %v1172
        %v1255 = vpop.f32.mrb[0].mxu0
        %v1256 = vadd.f32 0.0, %v1255
        %v1257 = vpop.f32.mrb[0].mxu0
        %1258 = vdwg.mxu0
        %v1259 = vld [vmem:[%s10] sm:$0xff]
        %v1260 = vld [vmem:[%s10 + $0x8] sm:$0xff]
        %v1261 = vld [vmem:[%s10 + $0x10] sm:$0xff]
        %v1262 = vld [vmem:[%s10 + $0x18] sm:$0xff]
        %v1263 = vld [vmem:[%s10 + $0x20] sm:$0xff]
        %v1264 = vld [vmem:[%s10 + $0x28] sm:$0xff]
        %v1265 = vld [vmem:[%s10 + $0x30] sm:$0xff]
        %v1266 = vld [vmem:[%s10 + $0x38] sm:$0xff]
        %v1267 = vld [vmem:[%s10 + $0x40] sm:$0xff]
        %v1268 = vld [vmem:[%s10 + $0x48] sm:$0xff]
        %v1269 = vld [vmem:[%s10 + $0x50] sm:$0xff]
        %v1270 = vld [vmem:[%s10 + $0x58] sm:$0xff]
        %v1271 = vld [vmem:[%s10 + $0x60] sm:$0xff]
        %v1272 = vld [vmem:[%s10 + $0x68] sm:$0xff]
        %v1273 = vld [vmem:[%s10 + $0x70] sm:$0xff]
        %v1274 = vld [vmem:[%s10 + $0x78] sm:$0xff]
        %1275 = vmatprep.subr.mxu0 0.0
        %1276 = vmatpush1.msra.mxu0 %v1259
        %1277 = vmatprep.subr.mxu0 0.0
        %1278 = vmatpush1.msra.mxu0 %v1260
        %1279 = vmatprep.subr.mxu0 0.0
        %1280 = vmatpush1.msra.mxu0 %v1261
        %1281 = vmatprep.subr.mxu0 0.0
        %1282 = vmatpush1.msra.mxu0 %v1262
        %1283 = vmatprep.subr.mxu0 0.0
        %1284 = vmatpush1.msra.mxu0 %v1263
        %1285 = vmatprep.subr.mxu0 0.0
        %1286 = vmatpush1.msra.mxu0 %v1264
        %1287 = vmatprep.subr.mxu0 0.0
        %1288 = vmatpush1.msra.mxu0 %v1265
        %1289 = vmatprep.subr.mxu0 0.0
        %1290 = vmatpush1.msra.mxu0 %v1266
        %1291 = vmatprep.subr.mxu0 0.0
        %1292 = vmatpush1.msra.mxu0 %v1267
        %1293 = vmatprep.subr.mxu0 0.0
        %1294 = vmatpush1.msra.mxu0 %v1268
        %1295 = vmatprep.subr.mxu0 0.0
        %1296 = vmatpush1.msra.mxu0 %v1269
        %1297 = vmatprep.subr.mxu0 0.0
        %1298 = vmatpush1.msra.mxu0 %v1270
        %1299 = vmatprep.subr.mxu0 0.0
        %1300 = vmatpush1.msra.mxu0 %v1271
        %1301 = vmatprep.subr.mxu0 0.0
        %1302 = vmatpush1.msra.mxu0 %v1272
        %1303 = vmatprep.subr.mxu0 0.0
        %1304 = vmatpush1.msra.mxu0 %v1273
        %1305 = vmatprep.subr.mxu0 0.0
        %1306 = vmatpush1.msra.mxu0 %v1274
        %1307 = vmatprep.subr.mxu0 0.0
        %1308 = vmatpush1.msra.mxu0 0.0
        %1309 = vmatprep.subr.mxu0 0.0
        %1310 = vmatpush1.msra.mxu0 0.0
        %1311 = vmatprep.subr.mxu0 0.0
        %1312 = vmatpush1.msra.mxu0 0.0
        %1313 = vmatprep.subr.mxu0 0.0
        %1314 = vmatpush1.msra.mxu0 0.0
        %1315 = vmatprep.subr.mxu0 0.0
        %1316 = vmatpush1.msra.mxu0 0.0
        %1317 = vmatprep.subr.mxu0 0.0
        %1318 = vmatpush1.msra.mxu0 0.0
        %1319 = vmatprep.subr.mxu0 0.0
        %1320 = vmatpush1.msra.mxu0 0.0
        %1321 = vmatprep.subr.mxu0 0.0
        %1322 = vmatpush1.msra.mxu0 0.0
        %1323 = vmatprep.subr.mxu0 0.0
        %1324 = vmatpush1.msra.mxu0 0.0
        %1325 = vmatprep.subr.mxu0 0.0
        %1326 = vmatpush1.msra.mxu0 0.0
        %1327 = vmatprep.subr.mxu0 0.0
        %1328 = vmatpush1.msra.mxu0 0.0
        %1329 = vmatprep.subr.mxu0 0.0
        %1330 = vmatpush1.msra.mxu0 0.0
        %1331 = vmatprep.subr.mxu0 0.0
        %1332 = vmatpush1.msra.mxu0 0.0
        %1333 = vmatprep.subr.mxu0 0.0
        %1334 = vmatpush1.msra.mxu0 0.0
        %1335 = vmatprep.subr.mxu0 0.0
        %1336 = vmatpush1.msra.mxu0 0.0
        %1337 = vmatprep.subr.mxu0 0.0
        %1338 = vmatpush1.msra.mxu0 0.0
        %1339 = vmatprep.mubr.f32.mxu0 0.0
        %1340 = vmatmul.mubr.f32.gmra.mrb[0].mxu0 %v1172
        %v1341 = vpop.f32.mrb[0].mxu0
        %v1342 = vadd.f32 0.0, %v1341
        %v1343 = vpop.f32.mrb[0].mxu0
        %1344 = vdwg.mxu0
        %1345 = vmatprep.subr.mxu0 0.0
        %1346 = vmatpush1.msra.mxu0 %v1256
        %1347 = vmatprep.subr.mxu0 0.0
        %1348 = vmatpush1.msra.mxu0 0.0
        %1349 = vmatprep.subr.mxu0 0.0
        %1350 = vmatpush1.msra.mxu0 0.0
        %1351 = vmatprep.subr.mxu0 0.0
        %1352 = vmatpush1.msra.mxu0 0.0
        %1353 = vmatprep.subr.mxu0 0.0
        %1354 = vmatpush1.msra.mxu0 0.0
        %1355 = vmatprep.subr.mxu0 0.0
        %1356 = vmatpush1.msra.mxu0 0.0
        %1357 = vmatprep.subr.mxu0 0.0
        %1358 = vmatpush1.msra.mxu0 0.0
        %1359 = vmatprep.subr.mxu0 0.0
        %1360 = vmatpush1.msra.mxu0 0.0
        %1361 = vmatprep.subr.mxu0 0.0
        %1362 = vmatpush1.msra.mxu0 0.0
        %1363 = vmatprep.subr.mxu0 0.0
        %1364 = vmatpush1.msra.mxu0 0.0
        %1365 = vmatprep.subr.mxu0 0.0
        %1366 = vmatpush1.msra.mxu0 0.0
        %1367 = vmatprep.subr.mxu0 0.0
        %1368 = vmatpush1.msra.mxu0 0.0
        %1369 = vmatprep.subr.mxu0 0.0
        %1370 = vmatpush1.msra.mxu0 0.0
        %1371 = vmatprep.subr.mxu0 0.0
        %1372 = vmatpush1.msra.mxu0 0.0
        %1373 = vmatprep.subr.mxu0 0.0
        %1374 = vmatpush1.msra.mxu0 0.0
        %1375 = vmatprep.subr.mxu0 0.0
        %1376 = vmatpush1.msra.mxu0 0.0
        %1377 = vmatprep.subr.mxu0 0.0
        %1378 = vmatpush1.msra.mxu0 0.0
        %1379 = vmatprep.subr.mxu0 0.0
        %1380 = vmatpush1.msra.mxu0 0.0
        %1381 = vmatprep.subr.mxu0 0.0
        %1382 = vmatpush1.msra.mxu0 0.0
        %1383 = vmatprep.subr.mxu0 0.0
        %1384 = vmatpush1.msra.mxu0 0.0
        %1385 = vmatprep.subr.mxu0 0.0
        %1386 = vmatpush1.msra.mxu0 0.0
        %1387 = vmatprep.subr.mxu0 0.0
        %1388 = vmatpush1.msra.mxu0 0.0
        %1389 = vmatprep.subr.mxu0 0.0
        %1390 = vmatpush1.msra.mxu0 0.0
        %1391 = vmatprep.subr.mxu0 0.0
        %1392 = vmatpush1.msra.mxu0 0.0
        %1393 = vmatprep.subr.mxu0 0.0
        %1394 = vmatpush1.msra.mxu0 0.0
        %1395 = vmatprep.subr.mxu0 0.0
        %1396 = vmatpush1.msra.mxu0 0.0
        %1397 = vmatprep.subr.mxu0 0.0
        %1398 = vmatpush1.msra.mxu0 0.0
        %1399 = vmatprep.subr.mxu0 0.0
        %1400 = vmatpush1.msra.mxu0 0.0
        %1401 = vmatprep.subr.mxu0 0.0
        %1402 = vmatpush1.msra.mxu0 0.0
        %1403 = vmatprep.subr.mxu0 0.0
        %1404 = vmatpush1.msra.mxu0 0.0
        %1405 = vmatprep.subr.mxu0 0.0
        %1406 = vmatpush1.msra.mxu0 0.0
        %1407 = vmatprep.subr.mxu0 0.0
        %1408 = vmatpush1.msra.mxu0 0.0
        %1409 = vmatprep.mubr.f32.mxu0 0.0
        %1410 = vmatmul.mubr.f32.gmra.mrb[0].mxu0 %v817
        %v1411 = vpop.f32.mrb[0].mxu0
        %v1412 = vadd.f32 %v1342, %v1411
        %v1413 = vpop.f32.mrb[0].mxu0
        %1414 = vdwg.mxu0
        %v1415 = vld [vmem:[%s11 + $0x7] sm:$0x1]
        %v1416 = vlaneseq
        %v1417 = vshrl.u32 %v1416, 7
        %v1418 = vsub.s32 0, %v1417
        %v1419 = vrot.slane %v1415, %v1418
        %v1420 = vadd.f32 %v1412, %v1419
        %v1421 = vld [vmem:[%s11 + $0x8] sm:$0x1]
        %v1422 = vlaneseq
        %v1423 = vshrl.u32 %v1422, 7
        %v1424 = vsub.s32 0, %v1423
        %v1425 = vrot.slane %v1421, %v1424
        %v1426 = vmul.f32 %v1420, %v1425
        %vm1427 = vcmask 523264
        %v1428 = vsel %vm1427, %v1426, 0.0
        %1429 = vadd.xlane.f32.xlu0 %v1428
        %v1430 = vpop.xlane.xlu0 %1429
        %v1431 = vadd.f32 %v1171, %v1430
        %v1432 = vrot.slane %v1431, 4
        %v1433 = vadd.f32 %v1431, %v1432
        %v1434 = vrot.slane %v1433, 2
        %v1435 = vadd.f32 %v1433, %v1434
        %v1436 = vrot.slane %v1435, 1
        %v1437 = vadd.f32 %v1435, %v1436
        %1438 = vst [vmem:[%s477] sm:$0xff] %v1437
        %s1439 = sand.u32 %s305, 1
        %s1440 = scalar_lea.sflag [#allocation4], %s1439
        %s1441 = sand.u32 %s305, 1
        %s1442 = smul.addr %s1441, 8
        %s1443 = scalar_lea.vmem [#allocation8], %s1442
        // Predicated region
        $region81: #{tpu_custom_call.1} parent=67 // pred_check
          %p1444 = pneg %p315
        $region82: #{tpu_custom_call.1} parent=67 // pred_check_branch
          %1446 = sbr.rel (%p1444) target = $region84
        $region83: #{tpu_custom_call.1} parent=67 // pred_region
          %s1448 = ssub.s32 128, 128
          %1449 = vsyncadd %s1440, %s1448
          %s1450 = smul.addr %s30, 128
          %s1451 = scalar_lea.hbm %s12, %s1450
          %s1453 = sshll.u32 %s1443, 4
          %s1454 = int_to_ptr.vmem [resolvable:$true] %s1453
          %1456 = dma.vmem_to_hbm [thread:$0]  %s1454, 128, %s1451, %s1440
        $region84: #{tpu_custom_call.1} parent=67 // pred_fallthru
          _
      $region68: #{tpu_custom_call.1} parent=5 // pred_fallthru
        _
      %p1457 = scmp.le.s32.totalorder 2, %s25
      // Predicated region
      $region85: #{tpu_custom_call.1} parent=5 // pred_check
        %p1458 = pneg %p1457
      $region86: #{tpu_custom_call.1} parent=5 // pred_check_branch
        %1460 = sbr.rel (%p1458) target = $region88
      $region87: #{tpu_custom_call.1} parent=5 // pred_region
        %s1461 = ssub.s32 %s25, 2
        // Predicated region
        $region89: #{tpu_custom_call.1} parent=87 // pred_check
          %p1462 = pneg %p321
        $region90: #{tpu_custom_call.1} parent=87 // pred_check_branch
          %1464 = sbr.rel (%p1462) target = $region92
        $region91: #{tpu_custom_call.1} parent=87 // pred_region
          %s1465 = sand.u32 %s306, 1
          %s1466 = scalar_lea.sflag [#allocation4], %s1465
          %s1467 = sand.u32 %s306, 1
          %s1468 = smul.addr %s1467, 8
          %s1469 = scalar_lea.vmem [#allocation8], %s1468
          %1470 = dma.done %s1466, 128
        $region92: #{tpu_custom_call.1} parent=87 // pred_fallthru
          _
      $region88: #{tpu_custom_call.1} parent=5 // pred_fallthru
        _
    $region6: #{tpu_custom_call.1} parent=1 // loop_footer
      %s29 = sadd.s32 1, %s25
    $region7: #{tpu_custom_call.1} parent=1 // loop_footer_branch
      %24 = sbr.rel target = $region3
    $region8: #{tpu_custom_call.1} parent=1 // loop_exit
      _
    %1471 = vsyncpa [#allocation3], 1
    %s1472 = scalar_lea.sflag [#allocation3], 1
    %1473 = vsyncpa %s1472, 1
    %1474 = vsyncpa [#allocation6], 1
    %1475 = vsyncpa [#allocation4], 1
    %s1476 = scalar_lea.sflag [#allocation4], 1
    %1477 = vsyncpa %s1476, 1

</llo_original>
